<compile_context>
chip_gen: v6e
topology: v6e:2x2x1
jax: 0.10.0
libtpu: 0.0.40
codegen_flags: <defaults>
</compile_context>

<pallas_src>
import functools

import jax
import jax.numpy as jnp
from jax import lax
from jax.experimental import pallas as pl
from jax.experimental.pallas import tpu as pltpu


# ---------------------------------------------------------------------------
# Fused kernel.  Grid = (batch, query_block).
#   x_full block : (1, L, C)   whole image, channels-last (projection input)
#   x_blk  block : (1, TQ, C)  this query block's rows (residual add)
#   wc / bc      : (C, C) bf16 / (1, C) f32      cv1 weight with BN folded
#   wqkv / bqkv  : (C, 3C) bf16 / (1, 3C) f32    stacked q/k/v 1x1-conv params
#   o block      : (1, TQ, C)
#   qkv_ref      : VMEM scratch (L, 3C) bf16, carried across query blocks
# ---------------------------------------------------------------------------
def _bot_fused_kernel(x_full_ref, x_blk_ref, wc_ref, bc_ref, wqkv_ref,
                      bqkv_ref, o_ref, qkv_ref, *, heads, tq):
    C = wc_ref.shape[0]
    d = C // heads
    qi = pl.program_id(1)

    # ---- projection phase: once per batch element (query block 0) ----------
    @pl.when(qi == 0)
    def _project():
        x_bf = x_full_ref[0].astype(jnp.bfloat16)                    # (L, C)
        y = jnp.dot(x_bf, wc_ref[...], preferred_element_type=jnp.float32)
        y = y + bc_ref[...]                                          # folded BN bias
        y = y * jax.nn.sigmoid(y)                                    # SiLU (f32)
        qkv = jnp.dot(y.astype(jnp.bfloat16), wqkv_ref[...],
                      preferred_element_type=jnp.float32)
        qkv = qkv + bqkv_ref[...]
        qkv_ref[...] = qkv.astype(jnp.bfloat16)                      # (L, 3C)

    # ---- attention for this query block -------------------------------------
    row0 = pl.multiple_of(qi * tq, tq)
    q_blk = qkv_ref[pl.ds(row0, tq), :]                              # (tq, 3C) bf16

    head_outs = []
    for h in range(heads):                                           # small, static
        qh = q_blk[:, h * d:(h + 1) * d]                             # (tq, d)
        kh = qkv_ref[:, C + h * d:C + (h + 1) * d]                   # (L, d)
        vh = qkv_ref[:, 2 * C + h * d:2 * C + (h + 1) * d]           # (L, d)
        # e[i, j] = sum_d q[i, d] * k[j, d]   (no 1/sqrt(d): matches module)
        e = lax.dot_general(qh, kh, (((1,), (1,)), ((), ())),
                            preferred_element_type=jnp.float32)      # (tq, L) f32
        m = jnp.max(e, axis=-1, keepdims=True)
        p = jnp.exp(e - m)
        inv_l = pl.reciprocal(jnp.sum(p, axis=-1, keepdims=True), approx=False)
        att = (p * inv_l).astype(jnp.bfloat16)
        head_outs.append(jnp.dot(att, vh,
                                 preferred_element_type=jnp.float32))  # (tq, d)

    attn_out = jnp.concatenate(head_outs, axis=-1)                   # (tq, C) f32
    # Residual add and single lane-dense full-block store.
    o_ref[0] = (x_blk_ref[0] + attn_out).astype(o_ref.dtype)


def _pick_q_tile(L):
    for t in (512, 256, 128):
        if L % t == 0:
            return t
    return L  # small / odd L: one query block


def bottleneck_transformer_forward(x, params):
    """x: (N, C, H, W) float32, same layout as the PyTorch module."""
    N, C, H, W = x.shape
    heads = params["heads"]
    assert C % heads == 0
    L = H * W
    tq = _pick_q_tile(L)
    nq = L // tq

    # Single layout fix-up to channels-last (done by XLA, layout plumbing only).
    xl = jnp.transpose(x, (0, 2, 3, 1)).reshape(N, L, C)
    kern = functools.partial(_bot_fused_kernel, heads=heads, tq=tq)

    out = pl.pallas_call(
        kern,
        out_shape=jax.ShapeDtypeStruct((N, L, C), x.dtype),
        grid_spec=pltpu.PrefetchScalarGridSpec(
            num_scalar_prefetch=0,
            grid=(N, nq),
            in_specs=[
                # Full image for the projection (same block across qi -> only
                # re-DMA'd when the batch index changes).
                pl.BlockSpec((1, L, C), lambda b, q: (b, 0, 0)),
                # This query block's rows for the residual add.
                pl.BlockSpec((1, tq, C), lambda b, q: (b, q, 0)),
                pl.BlockSpec((C, C), lambda b, q: (0, 0)),
                pl.BlockSpec((1, C), lambda b, q: (0, 0)),
                pl.BlockSpec((C, 3 * C), lambda b, q: (0, 0)),
                pl.BlockSpec((1, 3 * C), lambda b, q: (0, 0)),
            ],
            out_specs=pl.BlockSpec((1, tq, C), lambda b, q: (b, q, 0)),
            scratch_shapes=[pltpu.VMEM((L, 3 * C), jnp.bfloat16)],
        ),
        compiler_params=pltpu.CompilerParams(
            dimension_semantics=("parallel", "arbitrary"),
            vmem_limit_bytes=48 * 1024 * 1024),
    )(xl, xl, params["wc"], params["bc"], params["wqkv"], params["bqkv"])

    return jnp.transpose(out.reshape(N, H, W, C), (0, 3, 1, 2))


# ---------------------------------------------------------------------------
# Parameter init (deterministic, synthetic) with host-side folding/fusion.
# ---------------------------------------------------------------------------
def init_params(key, c1, c2, heads):
    assert c1 == c2 and c2 % heads == 0
    c_ = c2  # expansion = 1
    ks = jax.random.split(key, 10)

    # cv1: Conv2d 1x1 (Cout, Cin), no bias; BatchNorm2d(c_, eps=1e-3) in eval
    # mode folded into a per-channel scale/bias.
    w_cv1 = 0.1 * jax.random.normal(ks[0], (c_, c1), jnp.float32)
    gamma = 1.0 + 0.1 * jax.random.normal(ks[1], (c_,), jnp.float32)
    beta = 0.05 * jax.random.normal(ks[2], (c_,), jnp.float32)
    rmean = 0.02 * jax.random.normal(ks[3], (c_,), jnp.float32)
    rvar = 1.0 + 0.1 * jnp.abs(jax.random.normal(ks[4], (c_,), jnp.float32))
    eps = 1e-3
    scale = gamma / jnp.sqrt(rvar + eps)
    wc = (w_cv1 * scale[:, None]).T            # (Cin, Cout): channels-last matmul
    bc = (beta - rmean * scale)[None, :]       # (1, C) row bias

    # q/k/v 1x1 convs (bias=True, torch default), fused into one (C, 3C) matmul.
    w_q = 0.1 * jax.random.normal(ks[5], (c2, c2), jnp.float32)
    w_k = 0.1 * jax.random.normal(ks[6], (c2, c2), jnp.float32)
    w_v = 0.1 * jax.random.normal(ks[7], (c2, c2), jnp.float32)
    b_q = 0.02 * jax.random.normal(ks[8], (c2,), jnp.float32)
    b_k = 0.02 * jax.random.normal(ks[9], (c2,), jnp.float32)
    b_v = jnp.zeros((c2,), jnp.float32)
    wqkv = jnp.concatenate([w_q.T, w_k.T, w_v.T], axis=1)           # (C, 3C)
    bqkv = jnp.concatenate([b_q, b_k, b_v])[None, :]                # (1, 3C)

    # Matmul weights stored in bf16 (MXU-native); biases stay f32.
    # TODO(synk): self.fc1 (nn.Linear) is never used in forward; not materialized.
    return {"heads": heads,
            "wc": wc.astype(jnp.bfloat16), "bc": bc,
            "wqkv": wqkv.astype(jnp.bfloat16), "bqkv": bqkv}


# ---------------------------------------------------------------------------
# Pure-JAX reference (correctness check only; uses the same bf16 weights,
# upcast to f32, with highest-precision f32 math).
# ---------------------------------------------------------------------------
def reference_forward(x, params):
    N, C, H, W = x.shape
    heads = params["heads"]
    d = C // heads
    L = H * W
    xl = jnp.transpose(x, (0, 2, 3, 1)).reshape(N, L, C)
    wc = params["wc"].astype(jnp.float32)
    wqkv = params["wqkv"].astype(jnp.float32)
    y = jnp.einsum("nlc,co->nlo", xl, wc, precision="highest") + params["bc"][None]
    y = y * jax.nn.sigmoid(y)
    qkv = jnp.einsum("nlc,co->nlo", y, wqkv,
                     precision="highest") + params["bqkv"][None]
    q = qkv[..., :C].reshape(N, L, heads, d)
    k = qkv[..., C:2 * C].reshape(N, L, heads, d)
    v = qkv[..., 2 * C:].reshape(N, L, heads, d)
    e = jnp.einsum("nihd,njhd->nhij", q, k, precision="highest")
    att = jax.nn.softmax(e, axis=-1)
    out = jnp.einsum("nhij,njhd->nihd", att, v,
                     precision="highest").reshape(N, L, C)
    outl = xl + out
    return jnp.transpose(outl.reshape(N, H, W, C), (0, 3, 1, 2))


if __name__ == "__main__":
    # Small demo shapes: c1 = c2 = 32, resolution (8, 8), heads = 4 (d = 8).
    N, C, H, W = 2, 32, 8, 8
    heads = 4
    key = jax.random.PRNGKey(0)
    kx, kp = jax.random.split(key)
    x = jax.random.normal(kx, (N, C, H, W), jnp.float32)
    params = init_params(kp, C, C, heads)

    out = bottleneck_transformer_forward(x, params)
    out = jax.block_until_ready(out)

    assert out.shape == (N, C, H, W) and out.dtype == jnp.float32
    assert bool(jnp.all(jnp.isfinite(out)))

    ref = reference_forward(x, params)
    assert bool(jnp.allclose(out, ref, rtol=2e-2, atol=2e-2))

    print("KERNEL_OK")
</pallas_src>

<mosaic_0001>
module attributes {stable_mosaic.version = 11 : i64} {
  func.func @_bot_fused_kernel(%arg0: i32, %arg1: i32, %arg2: memref<1x64x32xf32, #tpu.memory_space<vmem>>, %arg3: memref<1x64x32xf32, #tpu.memory_space<vmem>>, %arg4: memref<32x32xbf16, #tpu.memory_space<vmem>>, %arg5: memref<1x32xf32, #tpu.memory_space<vmem>>, %arg6: memref<32x96xbf16, #tpu.memory_space<vmem>>, %arg7: memref<1x96xf32, #tpu.memory_space<vmem>>, %arg8: memref<1x64x32xf32, #tpu.memory_space<vmem>>, %arg9: memref<64x96xbf16, #tpu.memory_space<vmem>>) attributes {dimension_semantics = [#tpu.dimension_semantics<parallel>, #tpu.dimension_semantics<arbitrary>], iteration_bounds = array<i64: 2, 1>, scalar_prefetch = 0 : i64, scratch_operands = 1 : i64, tpu.core_type = #tpu.core_type<tc>, window_params = [{transform_indices = @transform_0, window_bounds = array<i64: 1, 64, 32>}, {transform_indices = @transform_1, window_bounds = array<i64: 1, 64, 32>}, {pipeline_mode = #tpu.pipeline_mode<synchronous>, transform_indices = @transform_2, window_bounds = array<i64: 32, 32>}, {pipeline_mode = #tpu.pipeline_mode<synchronous>, transform_indices = @transform_3, window_bounds = array<i64: 1, 32>}, {pipeline_mode = #tpu.pipeline_mode<synchronous>, transform_indices = @transform_4, window_bounds = array<i64: 32, 96>}, {pipeline_mode = #tpu.pipeline_mode<synchronous>, transform_indices = @transform_5, window_bounds = array<i64: 1, 96>}, {transform_indices = @transform_6, window_bounds = array<i64: 1, 64, 32>}]} {
    %c0_i32 = arith.constant 0 : i32
    %0 = arith.cmpi eq, %arg1, %c0_i32 : i32
    %1 = arith.extui %0 : i1 to i32
    %c0_i32_0 = arith.constant 0 : i32
    %2 = arith.cmpi ne, %1, %c0_i32_0 : i32
    scf.if %2 {
      %c0_30 = arith.constant 0 : index
      %c0_31 = arith.constant 0 : index
      %c0_32 = arith.constant 0 : index
      %78 = vector.load %arg2[%c0_30, %c0_31, %c0_32] : memref<1x64x32xf32, #tpu.memory_space<vmem>>, vector<1x64x32xf32>
      %79 = vector.shape_cast %78 : vector<1x64x32xf32> to vector<64x32xf32>
      %80 = arith.truncf %79 : vector<64x32xf32> to vector<64x32xbf16>
      %c0_33 = arith.constant 0 : index
      %c0_34 = arith.constant 0 : index
      %81 = vector.load %arg4[%c0_33, %c0_34] : memref<32x32xbf16, #tpu.memory_space<vmem>>, vector<32x32xbf16>
      %cst_35 = arith.constant dense<0.000000e+00> : vector<64x32xf32>
      %82 = tpu.matmul %80, %81, %cst_35 {dimension_numbers = #tpu.dot_dimension_numbers<[1], [0], [0], [1], [0, 0, 1, 1], [], []>} : vector<64x32xbf16>, vector<32x32xbf16>, vector<64x32xf32> -> vector<64x32xf32>
      %c0_36 = arith.constant 0 : index
      %c0_37 = arith.constant 0 : index
      %83 = vector.load %arg5[%c0_36, %c0_37] : memref<1x32xf32, #tpu.memory_space<vmem>>, vector<1x32xf32>
      %84 = vector.broadcast %83 : vector<1x32xf32> to vector<64x32xf32>
      %85 = arith.addf %82, %84 : vector<64x32xf32>
      %86 = arith.negf %85 : vector<64x32xf32>
      %87 = math.exp %86 : vector<64x32xf32>
      %cst_38 = arith.constant 1.000000e+00 : f32
      %88 = vector.broadcast %cst_38 : f32 to vector<64x32xf32>
      %89 = arith.addf %88, %87 : vector<64x32xf32>
      %90 = arith.divf %88, %89 : vector<64x32xf32>
      %91 = arith.mulf %85, %90 : vector<64x32xf32>
      %92 = arith.truncf %91 : vector<64x32xf32> to vector<64x32xbf16>
      %c0_39 = arith.constant 0 : index
      %c0_40 = arith.constant 0 : index
      %93 = vector.load %arg6[%c0_39, %c0_40] : memref<32x96xbf16, #tpu.memory_space<vmem>>, vector<32x96xbf16>
      %cst_41 = arith.constant dense<0.000000e+00> : vector<64x96xf32>
      %94 = tpu.matmul %92, %93, %cst_41 {dimension_numbers = #tpu.dot_dimension_numbers<[1], [0], [0], [1], [0, 0, 1, 1], [], []>} : vector<64x32xbf16>, vector<32x96xbf16>, vector<64x96xf32> -> vector<64x96xf32>
      %c0_42 = arith.constant 0 : index
      %c0_43 = arith.constant 0 : index
      %95 = vector.load %arg7[%c0_42, %c0_43] : memref<1x96xf32, #tpu.memory_space<vmem>>, vector<1x96xf32>
      %96 = vector.broadcast %95 : vector<1x96xf32> to vector<64x96xf32>
      %97 = arith.addf %94, %96 : vector<64x96xf32>
      %98 = arith.truncf %97 : vector<64x96xf32> to vector<64x96xbf16>
      %c0_44 = arith.constant 0 : index
      %c0_45 = arith.constant 0 : index
      %99 = vector.load %arg9[%c0_44, %c0_45] : memref<64x96xbf16, #tpu.memory_space<vmem>>, vector<64x96xbf16>
      tpu.vector_store %arg9[%c0_44, %c0_45], %98 {strides = array<i32>} : memref<64x96xbf16, #tpu.memory_space<vmem>>, vector<64x96xbf16>,
    } else {
    }
    %c64_i32 = arith.constant 64 : i32
    %3 = arith.muli %arg1, %c64_i32 : i32
    %4 = tpu.assume_multiple %3, 64 : i32
    %5 = arith.index_cast %4 : i32 to index
    %c0 = arith.constant 0 : index
    %6 = vector.load %arg9[%5, %c0] : memref<64x96xbf16, #tpu.memory_space<vmem>>, vector<64x96xbf16>
    %7 = vector.extract_strided_slice %6 {offsets = [0, 0], sizes = [64, 8], strides = [1, 1]} : vector<64x96xbf16> to vector<64x8xbf16>
    %c0_1 = arith.constant 0 : index
    %c32 = arith.constant 32 : index
    %8 = vector.load %arg9[%c0_1, %c32] : memref<64x96xbf16, #tpu.memory_space<vmem>>, vector<64x8xbf16>
    %c0_2 = arith.constant 0 : index
    %c64 = arith.constant 64 : index
    %9 = vector.load %arg9[%c0_2, %c64] : memref<64x96xbf16, #tpu.memory_space<vmem>>, vector<64x8xbf16>
    %cst = arith.constant dense<0.000000e+00> : vector<64x64xf32>
    %10 = tpu.matmul %7, %8, %cst {dimension_numbers = #tpu.dot_dimension_numbers<[1], [1], [0], [0], [0, 0, 1, 0], [], []>} : vector<64x8xbf16>, vector<64x8xbf16>, vector<64x64xf32> -> vector<64x64xf32>
    %cst_3 = arith.constant dense<0xFF800000> : vector<64xf32>
    %11 = vector.multi_reduction <maximumf>, %10, %cst_3 [1] : vector<64x64xf32> to vector<64xf32>
    %12 = vector.shape_cast %11 : vector<64xf32> to vector<64x1xf32>
    %13 = vector.broadcast %12 : vector<64x1xf32> to vector<64x64xf32>
    %14 = arith.subf %10, %13 : vector<64x64xf32>
    %15 = math.exp %14 : vector<64x64xf32>
    %cst_4 = arith.constant dense<0.000000e+00> : vector<64xf32>
    %16 = vector.multi_reduction <add>, %15, %cst_4 [1] : vector<64x64xf32> to vector<64xf32>
    %17 = vector.shape_cast %16 : vector<64xf32> to vector<64x1xf32>
    %18 = tpu.reciprocal %17 : vector<64x1xf32> -> vector<64x1xf32>
    %19 = vector.broadcast %18 : vector<64x1xf32> to vector<64x64xf32>
    %20 = arith.mulf %15, %19 : vector<64x64xf32>
    %21 = arith.truncf %20 : vector<64x64xf32> to vector<64x64xbf16>
    %cst_5 = arith.constant dense<0.000000e+00> : vector<64x8xf32>
    %22 = tpu.matmul %21, %9, %cst_5 {dimension_numbers = #tpu.dot_dimension_numbers<[1], [0], [0], [1], [0, 0, 1, 1], [], []>} : vector<64x64xbf16>, vector<64x8xbf16>, vector<64x8xf32> -> vector<64x8xf32>
    %23 = vector.extract_strided_slice %6 {offsets = [0, 8], sizes = [64, 8], strides = [1, 1]} : vector<64x96xbf16> to vector<64x8xbf16>
    %c0_6 = arith.constant 0 : index
    %c40 = arith.constant 40 : index
    %24 = vector.load %arg9[%c0_6, %c40] : memref<64x96xbf16, #tpu.memory_space<vmem>>, vector<64x8xbf16>
    %c0_7 = arith.constant 0 : index
    %c72 = arith.constant 72 : index
    %25 = vector.load %arg9[%c0_7, %c72] : memref<64x96xbf16, #tpu.memory_space<vmem>>, vector<64x8xbf16>
    %cst_8 = arith.constant dense<0.000000e+00> : vector<64x64xf32>
    %26 = tpu.matmul %23, %24, %cst_8 {dimension_numbers = #tpu.dot_dimension_numbers<[1], [1], [0], [0], [0, 0, 1, 0], [], []>} : vector<64x8xbf16>, vector<64x8xbf16>, vector<64x64xf32> -> vector<64x64xf32>
    %cst_9 = arith.constant dense<0xFF800000> : vector<64xf32>
    %27 = vector.multi_reduction <maximumf>, %26, %cst_9 [1] : vector<64x64xf32> to vector<64xf32>
    %28 = vector.shape_cast %27 : vector<64xf32> to vector<64x1xf32>
    %29 = vector.broadcast %28 : vector<64x1xf32> to vector<64x64xf32>
    %30 = arith.subf %26, %29 : vector<64x64xf32>
    %31 = math.exp %30 : vector<64x64xf32>
    %cst_10 = arith.constant dense<0.000000e+00> : vector<64xf32>
    %32 = vector.multi_reduction <add>, %31, %cst_10 [1] : vector<64x64xf32> to vector<64xf32>
    %33 = vector.shape_cast %32 : vector<64xf32> to vector<64x1xf32>
    %34 = tpu.reciprocal %33 : vector<64x1xf32> -> vector<64x1xf32>
    %35 = vector.broadcast %34 : vector<64x1xf32> to vector<64x64xf32>
    %36 = arith.mulf %31, %35 : vector<64x64xf32>
    %37 = arith.truncf %36 : vector<64x64xf32> to vector<64x64xbf16>
    %cst_11 = arith.constant dense<0.000000e+00> : vector<64x8xf32>
    %38 = tpu.matmul %37, %25, %cst_11 {dimension_numbers = #tpu.dot_dimension_numbers<[1], [0], [0], [1], [0, 0, 1, 1], [], []>} : vector<64x64xbf16>, vector<64x8xbf16>, vector<64x8xf32> -> vector<64x8xf32>
    %39 = vector.extract_strided_slice %6 {offsets = [0, 16], sizes = [64, 8], strides = [1, 1]} : vector<64x96xbf16> to vector<64x8xbf16>
    %c0_12 = arith.constant 0 : index
    %c48 = arith.constant 48 : index
    %40 = vector.load %arg9[%c0_12, %c48] : memref<64x96xbf16, #tpu.memory_space<vmem>>, vector<64x8xbf16>
    %c0_13 = arith.constant 0 : index
    %c80 = arith.constant 80 : index
    %41 = vector.load %arg9[%c0_13, %c80] : memref<64x96xbf16, #tpu.memory_space<vmem>>, vector<64x8xbf16>
    %cst_14 = arith.constant dense<0.000000e+00> : vector<64x64xf32>
    %42 = tpu.matmul %39, %40, %cst_14 {dimension_numbers = #tpu.dot_dimension_numbers<[1], [1], [0], [0], [0, 0, 1, 0], [], []>} : vector<64x8xbf16>, vector<64x8xbf16>, vector<64x64xf32> -> vector<64x64xf32>
    %cst_15 = arith.constant dense<0xFF800000> : vector<64xf32>
    %43 = vector.multi_reduction <maximumf>, %42, %cst_15 [1] : vector<64x64xf32> to vector<64xf32>
    %44 = vector.shape_cast %43 : vector<64xf32> to vector<64x1xf32>
    %45 = vector.broadcast %44 : vector<64x1xf32> to vector<64x64xf32>
    %46 = arith.subf %42, %45 : vector<64x64xf32>
    %47 = math.exp %46 : vector<64x64xf32>
    %cst_16 = arith.constant dense<0.000000e+00> : vector<64xf32>
    %48 = vector.multi_reduction <add>, %47, %cst_16 [1] : vector<64x64xf32> to vector<64xf32>
    %49 = vector.shape_cast %48 : vector<64xf32> to vector<64x1xf32>
    %50 = tpu.reciprocal %49 : vector<64x1xf32> -> vector<64x1xf32>
    %51 = vector.broadcast %50 : vector<64x1xf32> to vector<64x64xf32>
    %52 = arith.mulf %47, %51 : vector<64x64xf32>
    %53 = arith.truncf %52 : vector<64x64xf32> to vector<64x64xbf16>
    %cst_17 = arith.constant dense<0.000000e+00> : vector<64x8xf32>
    %54 = tpu.matmul %53, %41, %cst_17 {dimension_numbers = #tpu.dot_dimension_numbers<[1], [0], [0], [1], [0, 0, 1, 1], [], []>} : vector<64x64xbf16>, vector<64x8xbf16>, vector<64x8xf32> -> vector<64x8xf32>
    %55 = vector.extract_strided_slice %6 {offsets = [0, 24], sizes = [64, 8], strides = [1, 1]} : vector<64x96xbf16> to vector<64x8xbf16>
    %c0_18 = arith.constant 0 : index
    %c56 = arith.constant 56 : index
    %56 = vector.load %arg9[%c0_18, %c56] : memref<64x96xbf16, #tpu.memory_space<vmem>>, vector<64x8xbf16>
    %c0_19 = arith.constant 0 : index
    %c88 = arith.constant 88 : index
    %57 = vector.load %arg9[%c0_19, %c88] : memref<64x96xbf16, #tpu.memory_space<vmem>>, vector<64x8xbf16>
    %cst_20 = arith.constant dense<0.000000e+00> : vector<64x64xf32>
    %58 = tpu.matmul %55, %56, %cst_20 {dimension_numbers = #tpu.dot_dimension_numbers<[1], [1], [0], [0], [0, 0, 1, 0], [], []>} : vector<64x8xbf16>, vector<64x8xbf16>, vector<64x64xf32> -> vector<64x64xf32>
    %cst_21 = arith.constant dense<0xFF800000> : vector<64xf32>
    %59 = vector.multi_reduction <maximumf>, %58, %cst_21 [1] : vector<64x64xf32> to vector<64xf32>
    %60 = vector.shape_cast %59 : vector<64xf32> to vector<64x1xf32>
    %61 = vector.broadcast %60 : vector<64x1xf32> to vector<64x64xf32>
    %62 = arith.subf %58, %61 : vector<64x64xf32>
    %63 = math.exp %62 : vector<64x64xf32>
    %cst_22 = arith.constant dense<0.000000e+00> : vector<64xf32>
    %64 = vector.multi_reduction <add>, %63, %cst_22 [1] : vector<64x64xf32> to vector<64xf32>
    %65 = vector.shape_cast %64 : vector<64xf32> to vector<64x1xf32>
    %66 = tpu.reciprocal %65 : vector<64x1xf32> -> vector<64x1xf32>
    %67 = vector.broadcast %66 : vector<64x1xf32> to vector<64x64xf32>
    %68 = arith.mulf %63, %67 : vector<64x64xf32>
    %69 = arith.truncf %68 : vector<64x64xf32> to vector<64x64xbf16>
    %cst_23 = arith.constant dense<0.000000e+00> : vector<64x8xf32>
    %70 = tpu.matmul %69, %57, %cst_23 {dimension_numbers = #tpu.dot_dimension_numbers<[1], [0], [0], [1], [0, 0, 1, 1], [], []>} : vector<64x64xbf16>, vector<64x8xbf16>, vector<64x8xf32> -> vector<64x8xf32>
    %71 = tpu.concatenate %22, %38, %54, %70 in 1 : vector<64x8xf32>, vector<64x8xf32>, vector<64x8xf32>, vector<64x8xf32> -> vector<64x32xf32>
    %c0_24 = arith.constant 0 : index
    %c0_25 = arith.constant 0 : index
    %c0_26 = arith.constant 0 : index
    %72 = vector.load %arg3[%c0_24, %c0_25, %c0_26] : memref<1x64x32xf32, #tpu.memory_space<vmem>>, vector<1x64x32xf32>
    %73 = vector.shape_cast %72 : vector<1x64x32xf32> to vector<64x32xf32>
    %74 = arith.addf %73, %71 : vector<64x32xf32>
    %c0_27 = arith.constant 0 : index
    %c0_28 = arith.constant 0 : index
    %c0_29 = arith.constant 0 : index
    %75 = vector.load %arg8[%c0_27, %c0_28, %c0_29] : memref<1x64x32xf32, #tpu.memory_space<vmem>>, vector<1x64x32xf32>
    %76 = vector.shape_cast %75 : vector<1x64x32xf32> to vector<64x32xf32>
    %77 = vector.shape_cast %74 : vector<64x32xf32> to vector<1x64x32xf32>
    tpu.vector_store %arg8[%c0_27, %c0_28, %c0_29], %77 {strides = array<i32>} : memref<1x64x32xf32, #tpu.memory_space<vmem>>, vector<1x64x32xf32>,
    return
  }
  func.func @transform_0(%arg0: i32, %arg1: i32) -> (i32, i32, i32) {
    %c0_i32 = arith.constant 0 : i32
    %c0_i32_0 = arith.constant 0 : i32
    %c0_i32_1 = arith.constant 0 : i32
    return %arg0, %c0_i32, %c0_i32_0 : i32, i32, i32
  }
  func.func @transform_1(%arg0: i32, %arg1: i32) -> (i32, i32, i32) {
    %c0_i32 = arith.constant 0 : i32
    %c0_i32_0 = arith.constant 0 : i32
    return %arg0, %arg1, %c0_i32 : i32, i32, i32
  }
  func.func @transform_2(%arg0: i32, %arg1: i32) -> (i32, i32) {
    %c0_i32 = arith.constant 0 : i32
    %c0_i32_0 = arith.constant 0 : i32
    %c0_i32_1 = arith.constant 0 : i32
    return %c0_i32, %c0_i32_0 : i32, i32
  }
  func.func @transform_3(%arg0: i32, %arg1: i32) -> (i32, i32) {
    %c0_i32 = arith.constant 0 : i32
    %c0_i32_0 = arith.constant 0 : i32
    %c0_i32_1 = arith.constant 0 : i32
    return %c0_i32, %c0_i32_0 : i32, i32
  }
  func.func @transform_4(%arg0: i32, %arg1: i32) -> (i32, i32) {
    %c0_i32 = arith.constant 0 : i32
    %c0_i32_0 = arith.constant 0 : i32
    %c0_i32_1 = arith.constant 0 : i32
    return %c0_i32, %c0_i32_0 : i32, i32
  }
  func.func @transform_5(%arg0: i32, %arg1: i32) -> (i32, i32) {
    %c0_i32 = arith.constant 0 : i32
    %c0_i32_0 = arith.constant 0 : i32
    %c0_i32_1 = arith.constant 0 : i32
    return %c0_i32, %c0_i32_0 : i32, i32
  }
  func.func @transform_6(%arg0: i32, %arg1: i32) -> (i32, i32, i32) {
    %c0_i32 = arith.constant 0 : i32
    %c0_i32_0 = arith.constant 0 : i32
    return %arg0, %arg1, %c0_i32 : i32, i32, i32
  }
}

</mosaic_0001>

<llo_original>
// kernel: tpu_custom_call.1
$region0: #{tpu_custom_call.1}
  #allocation0 [shape = 'u32[]', space=smem, size = 0x4, offset = 0x4, fixed_abs, tag = 'smem constant byte address 0x4 - core index']
  #allocation1 [shape = 'u32[144,128]{1,0:T(1,128)}', space=vmem, size = 0x12000, scoped, tag = 'internal scratch']
  #allocation2 [shape = 'bf16[64,96]{1,0:T(8,128)(2,1)}', space=vmem, size = 0x4000, scoped, tag = 'scratch operand']
  %s0 = inlined_call_operand.vmem [shape: f32[2,64,32], index: 0, kind: input, shape index: {}]
  %s1 = inlined_call_operand.vmem [shape: f32[2,64,32], index: 1, kind: input, shape index: {}]
  %s2 = inlined_call_operand.vmem [shape: bf16[32,32], index: 2, kind: input, shape index: {}]
  %s3 = inlined_call_operand.vmem [shape: f32[1,32], index: 3, kind: input, shape index: {}]
  %s4 = inlined_call_operand.vmem [shape: bf16[32,96], index: 4, kind: input, shape index: {}]
  %s5 = inlined_call_operand.vmem [shape: f32[1,96], index: 5, kind: input, shape index: {}]
  %s6 = inlined_call_operand.vmem [shape: f32[2,64,32], index: 6, kind: output, shape index: {}]
  %s7 = sld [smem:[#allocation0]]
  $region61: #{tpu_custom_call.1} parent=0
    _
  %s9 = ssub.s32 1, %s7
  %s10 = scalar_select 0, %s9, %s7
  loop: start=0, step=1, limit=4
  $region2: #{tpu_custom_call.1} parent=0 // loop_pre_header
    _
  $region3: #{tpu_custom_call.1} parent=0 // loop_header
    %s12 = sphi 0, %s16
    %p13 = scmp.ge.s32.totalorder %s12, 4
    %s19 = sphi 0, %s31
    %s20 = sphi 0, %s27
    %s21 = sphi 0, %s19
    %s22 = sphi 0, %s20
    %s23 = sphi 0, %s21
    %s24 = sphi 0, %s22
    %s34 = sphi 0, %s36
    %s37 = sphi 0, %s34
    %s38 = sphi 0, %s37
    %s54 = sphi 0, %s38
    %s62 = sphi 0, %s64
    %s65 = sphi 0, %s62
    %s66 = sphi 0, %s65
    %s82 = sphi 0, %s66
    %s86 = sphi 0, %s86
    %s88 = sphi 0, %s86
    %s89 = sphi 0, %s88
    %s103 = sphi 0, %s89
    %s107 = sphi 0, %s107
    %s109 = sphi 0, %s107
    %s110 = sphi 0, %s109
    %s124 = sphi 0, %s110
    %s128 = sphi 0, %s128
    %s130 = sphi 0, %s128
    %s131 = sphi 0, %s130
    %s145 = sphi 0, %s131
    %s149 = sphi 0, %s149
    %s151 = sphi 0, %s149
    %s152 = sphi 0, %s151
    %s166 = sphi 0, %s152
    %s174 = sphi 0, %s176
    %s177 = sphi 0, %s174
    %s178 = sphi 0, %s177
    %s194 = sphi 0, %s178
  $region4: #{tpu_custom_call.1} parent=0 // loop_header_branch
    %15 = sbr.rel (%p13) target = $region8
  $region5: #{tpu_custom_call.1} parent=0 // loop_body
    %s17 = ssub.s32 %s12, 1
    %s18 = ssub.s32 %s12, 2
    %s25 = sadd.s32 1, %s20
    %p26 = scmp.ge.s32.totalorder %s25, 1
    %s27 = scalar_select %p26, 0, %s25
    %s28 = sadd.s32 1, %s19
    %s29 = scalar_select %p26, %s28, %s19
    %p30 = scmp.ge.s32.totalorder %s29, 2
    %s31 = scalar_select %p30, 0, %s29
    %s32 = ssub.s32 %s19, %s31
    %p33 = scmp.eq.s32.totalorder %s32, 0
    %s35 = sadd.s32 %s34, 1
    %s36 = scalar_select %p33, %s34, %s35
    %p39 = pneg %p33
    %p40 = scmp.eq.s32.totalorder %s12, 1
    %p41 = por %p39, %p40
    %p42 = scmp.ne.s32.totalorder %s34, %s37
    %p43 = scmp.eq.s32.totalorder %s12, 0
    %p44 = por %p42, %p43
    %p45 = scmp.ne.s32.totalorder %s34, %s37
    %p46 = scmp.eq.s32.totalorder %s17, 1
    %p47 = por %p45, %p46
    %p48 = scmp.ne.s32.totalorder %s37, %s38
    %p49 = scmp.eq.s32.totalorder %s17, 0
    %p50 = por %p48, %p49
    %p51 = scmp.ne.s32.totalorder %s37, %s38
    %p52 = scmp.eq.s32.totalorder %s18, 1
    %p53 = por %p51, %p52
    %p55 = scmp.ne.s32.totalorder %s38, %s54
    %p56 = scmp.eq.s32.totalorder %s18, 0
    %p57 = por %p55, %p56
    %s58 = ssub.s32 %s19, %s31
    %s59 = ssub.s32 %s20, %s27
    %s60 = sor.u32 %s58, %s59
    %p61 = scmp.eq.s32.totalorder %s60, 0
    %s63 = sadd.s32 %s62, 1
    %s64 = scalar_select %p61, %s62, %s63
    %p67 = pneg %p61
    %p68 = scmp.eq.s32.totalorder %s12, 1
    %p69 = por %p67, %p68
    %p70 = scmp.ne.s32.totalorder %s62, %s65
    %p71 = scmp.eq.s32.totalorder %s12, 0
    %p72 = por %p70, %p71
    %p73 = scmp.ne.s32.totalorder %s62, %s65
    %p74 = scmp.eq.s32.totalorder %s17, 1
    %p75 = por %p73, %p74
    %p76 = scmp.ne.s32.totalorder %s65, %s66
    %p77 = scmp.eq.s32.totalorder %s17, 0
    %p78 = por %p76, %p77
    %p79 = scmp.ne.s32.totalorder %s65, %s66
    %p80 = scmp.eq.s32.totalorder %s18, 1
    %p81 = por %p79, %p80
    %p83 = scmp.ne.s32.totalorder %s66, %s82
    %p84 = scmp.eq.s32.totalorder %s18, 0
    %p85 = por %p83, %p84
    %s87 = sadd.s32 %s86, 1
    %p90 = scmp.eq.s32.totalorder %s12, 1
    %p91 = scmp.ne.s32.totalorder %s86, %s88
    %p92 = scmp.eq.s32.totalorder %s12, 0
    %p93 = por %p91, %p92
    %p94 = scmp.ne.s32.totalorder %s86, %s88
    %p95 = scmp.eq.s32.totalorder %s17, 1
    %p96 = por %p94, %p95
    %p97 = scmp.ne.s32.totalorder %s88, %s89
    %p98 = scmp.eq.s32.totalorder %s17, 0
    %p99 = por %p97, %p98
    %p100 = scmp.ne.s32.totalorder %s88, %s89
    %p101 = scmp.eq.s32.totalorder %s18, 1
    %p102 = por %p100, %p101
    %p104 = scmp.ne.s32.totalorder %s89, %s103
    %p105 = scmp.eq.s32.totalorder %s18, 0
    %p106 = por %p104, %p105
    %s108 = sadd.s32 %s107, 1
    %p111 = scmp.eq.s32.totalorder %s12, 1
    %p112 = scmp.ne.s32.totalorder %s107, %s109
    %p113 = scmp.eq.s32.totalorder %s12, 0
    %p114 = por %p112, %p113
    %p115 = scmp.ne.s32.totalorder %s107, %s109
    %p116 = scmp.eq.s32.totalorder %s17, 1
    %p117 = por %p115, %p116
    %p118 = scmp.ne.s32.totalorder %s109, %s110
    %p119 = scmp.eq.s32.totalorder %s17, 0
    %p120 = por %p118, %p119
    %p121 = scmp.ne.s32.totalorder %s109, %s110
    %p122 = scmp.eq.s32.totalorder %s18, 1
    %p123 = por %p121, %p122
    %p125 = scmp.ne.s32.totalorder %s110, %s124
    %p126 = scmp.eq.s32.totalorder %s18, 0
    %p127 = por %p125, %p126
    %s129 = sadd.s32 %s128, 1
    %p132 = scmp.eq.s32.totalorder %s12, 1
    %p133 = scmp.ne.s32.totalorder %s128, %s130
    %p134 = scmp.eq.s32.totalorder %s12, 0
    %p135 = por %p133, %p134
    %p136 = scmp.ne.s32.totalorder %s128, %s130
    %p137 = scmp.eq.s32.totalorder %s17, 1
    %p138 = por %p136, %p137
    %p139 = scmp.ne.s32.totalorder %s130, %s131
    %p140 = scmp.eq.s32.totalorder %s17, 0
    %p141 = por %p139, %p140
    %p142 = scmp.ne.s32.totalorder %s130, %s131
    %p143 = scmp.eq.s32.totalorder %s18, 1
    %p144 = por %p142, %p143
    %p146 = scmp.ne.s32.totalorder %s131, %s145
    %p147 = scmp.eq.s32.totalorder %s18, 0
    %p148 = por %p146, %p147
    %s150 = sadd.s32 %s149, 1
    %p153 = scmp.eq.s32.totalorder %s12, 1
    %p154 = scmp.ne.s32.totalorder %s149, %s151
    %p155 = scmp.eq.s32.totalorder %s12, 0
    %p156 = por %p154, %p155
    %p157 = scmp.ne.s32.totalorder %s149, %s151
    %p158 = scmp.eq.s32.totalorder %s17, 1
    %p159 = por %p157, %p158
    %p160 = scmp.ne.s32.totalorder %s151, %s152
    %p161 = scmp.eq.s32.totalorder %s17, 0
    %p162 = por %p160, %p161
    %p163 = scmp.ne.s32.totalorder %s151, %s152
    %p164 = scmp.eq.s32.totalorder %s18, 1
    %p165 = por %p163, %p164
    %p167 = scmp.ne.s32.totalorder %s152, %s166
    %p168 = scmp.eq.s32.totalorder %s18, 0
    %p169 = por %p167, %p168
    %s170 = ssub.s32 %s19, %s31
    %s171 = ssub.s32 %s20, %s27
    %s172 = sor.u32 %s170, %s171
    %p173 = scmp.eq.s32.totalorder %s172, 0
    %s175 = sadd.s32 %s174, 1
    %s176 = scalar_select %p173, %s174, %s175
    %p179 = pneg %p173
    %p180 = scmp.eq.s32.totalorder %s12, 1
    %p181 = por %p179, %p180
    %p182 = scmp.ne.s32.totalorder %s174, %s177
    %p183 = scmp.eq.s32.totalorder %s12, 0
    %p184 = por %p182, %p183
    %p185 = scmp.ne.s32.totalorder %s174, %s177
    %p186 = scmp.eq.s32.totalorder %s17, 1
    %p187 = por %p185, %p186
    %p188 = scmp.ne.s32.totalorder %s177, %s178
    %p189 = scmp.eq.s32.totalorder %s17, 0
    %p190 = por %p188, %p189
    %p191 = scmp.ne.s32.totalorder %s177, %s178
    %p192 = scmp.eq.s32.totalorder %s18, 1
    %p193 = por %p191, %p192
    %p195 = scmp.ne.s32.totalorder %s178, %s194
    %p196 = scmp.eq.s32.totalorder %s18, 0
    %p197 = por %p195, %p196
    %p198 = scmp.le.s32.totalorder 1, %s12
    %p199 = scmp.lt.s32.totalorder %s12, 3
    %p200 = pnand %p198, %p199
    %p201 = pneg %p200
    // Predicated region
    $region9: #{tpu_custom_call.1} parent=5 // pred_check
      _
    $region10: #{tpu_custom_call.1} parent=5 // pred_check_branch
      %203 = sbr.rel (%p200) target = $region12
    $region11: #{tpu_custom_call.1} parent=5 // pred_region
      %s204 = ssub.s32 %s12, 1
      // Predicated region
      $region13: #{tpu_custom_call.1} parent=11 // pred_check
        %p205 = pneg %p99
      $region14: #{tpu_custom_call.1} parent=11 // pred_check_branch
        %207 = sbr.rel (%p205) target = $region16
      $region15: #{tpu_custom_call.1} parent=11 // pred_region
        _
      $region16: #{tpu_custom_call.1} parent=11 // pred_fallthru
        _
      // Predicated region
      $region17: #{tpu_custom_call.1} parent=11 // pred_check
        %p208 = pneg %p120
      $region18: #{tpu_custom_call.1} parent=11 // pred_check_branch
        %210 = sbr.rel (%p208) target = $region20
      $region19: #{tpu_custom_call.1} parent=11 // pred_region
        _
      $region20: #{tpu_custom_call.1} parent=11 // pred_fallthru
        _
      // Predicated region
      $region21: #{tpu_custom_call.1} parent=11 // pred_check
        %p211 = pneg %p141
      $region22: #{tpu_custom_call.1} parent=11 // pred_check_branch
        %213 = sbr.rel (%p211) target = $region24
      $region23: #{tpu_custom_call.1} parent=11 // pred_region
        _
      $region24: #{tpu_custom_call.1} parent=11 // pred_fallthru
        _
      // Predicated region
      $region25: #{tpu_custom_call.1} parent=11 // pred_check
        %p214 = pneg %p162
      $region26: #{tpu_custom_call.1} parent=11 // pred_check_branch
        %216 = sbr.rel (%p214) target = $region28
      $region27: #{tpu_custom_call.1} parent=11 // pred_region
        _
      $region28: #{tpu_custom_call.1} parent=11 // pred_fallthru
        _
    $region12: #{tpu_custom_call.1} parent=5 // pred_fallthru
      _
    %p217 = scmp.lt.s32.totalorder %s12, 2
    // Predicated region
    $region29: #{tpu_custom_call.1} parent=5 // pred_check
      %p218 = pneg %p217
    $region30: #{tpu_custom_call.1} parent=5 // pred_check_branch
      %220 = sbr.rel (%p218) target = $region32
    $region31: #{tpu_custom_call.1} parent=5 // pred_region
      // Predicated region
      $region33: #{tpu_custom_call.1} parent=31 // pred_check
        %p221 = pneg %p44
      $region34: #{tpu_custom_call.1} parent=31 // pred_check_branch
        %223 = sbr.rel (%p221) target = $region36
      $region35: #{tpu_custom_call.1} parent=31 // pred_region
        %p224 = scmp.lt.s32.totalorder %s19, 1
        %s225 = scalar_select %p224, %s19, 1
        %s226 = smul.addr %s225, 8
        %s227 = smul.addr %s226, 8
        %s228 = scalar_lea.vmem %s0, %s227
      $region36: #{tpu_custom_call.1} parent=31 // pred_fallthru
        _
      // Predicated region
      $region37: #{tpu_custom_call.1} parent=31 // pred_check
        %p229 = pneg %p72
      $region38: #{tpu_custom_call.1} parent=31 // pred_check_branch
        %231 = sbr.rel (%p229) target = $region40
      $region39: #{tpu_custom_call.1} parent=31 // pred_region
        %s232 = smul.u32 8, %s20
        %p233 = scmp.lt.s32.totalorder %s19, 1
        %s234 = scalar_select %p233, %s19, 1
        %p235 = scmp.lt.s32.totalorder %s232, 7
        %s236 = scalar_select %p235, %s232, 7
        %s237 = smul.addr %s234, 8
        %s238 = sadd.s32 %s236, %s237
        %s239 = smul.addr %s238, 8
        %s240 = scalar_lea.vmem %s1, %s239
        %s241 = smul.u32 8, %s20
      $region40: #{tpu_custom_call.1} parent=31 // pred_fallthru
        _
    $region32: #{tpu_custom_call.1} parent=5 // pred_fallthru
      _
    %p242 = scmp.le.s32.totalorder 1, %s12
    %p243 = scmp.lt.s32.totalorder %s12, 3
    %p244 = pnand %p242, %p243
    %p245 = pneg %p244
    // Predicated region
    $region41: #{tpu_custom_call.1} parent=5 // pred_check
      _
    $region42: #{tpu_custom_call.1} parent=5 // pred_check_branch
      %247 = sbr.rel (%p244) target = $region44
    $region43: #{tpu_custom_call.1} parent=5 // pred_region
      %s248 = ssub.s32 %s12, 1
      %p249 = scmp.lt.s32.totalorder %s21, 1
      %s250 = scalar_select %p249, %s21, 1
      %s251 = smul.addr %s250, 8
      %s252 = smul.addr %s251, 8
      %s253 = scalar_lea.vmem %s0, %s252
      %p254 = pneg %p50
      %p255 = pneg %p47
      %s256 = smul.u32 8, %s22
      %p257 = scmp.lt.s32.totalorder %s21, 1
      %s258 = scalar_select %p257, %s21, 1
      %p259 = scmp.lt.s32.totalorder %s256, 7
      %s260 = scalar_select %p259, %s256, 7
      %s261 = smul.addr %s258, 8
      %s262 = sadd.s32 %s260, %s261
      %s263 = smul.addr %s262, 8
      %s264 = scalar_lea.vmem %s1, %s263
      %p265 = pneg %p78
      %p266 = pneg %p75
      %p267 = pneg %p99
      %p268 = pneg %p96
      %p269 = pneg %p120
      %p270 = pneg %p117
      %p271 = pneg %p141
      %p272 = pneg %p138
      %p273 = pneg %p162
      %p274 = pneg %p159
      %p275 = pneg %p190
      %p276 = pneg %p187
      %s277 = smul.u32 8, %s22
      %p278 = scmp.lt.s32.totalorder %s21, 1
      %s279 = scalar_select %p278, %s21, 1
      %p280 = scmp.lt.s32.totalorder %s277, 7
      %s281 = scalar_select %p280, %s277, 7
      %s282 = smul.addr %s279, 8
      %s283 = sadd.s32 %s281, %s282
      %s284 = smul.addr %s283, 8
      %s285 = scalar_lea.vmem %s6, %s284
      %p286 = scmp.lt.s32.totalorder %s21, 1
      %s287 = scalar_select %p286, %s21, 1
      %s288 = smul.addr %s287, 8
      %s289 = smul.addr %s288, 8
      %s290 = scalar_lea.vmem %s0, %s289
      %s291 = smul.u32 8, %s22
      %p292 = scmp.lt.s32.totalorder %s21, 1
      %s293 = scalar_select %p292, %s21, 1
      %p294 = scmp.lt.s32.totalorder %s291, 7
      %s295 = scalar_select %p294, %s291, 7
      %s296 = smul.addr %s293, 8
      %s297 = sadd.s32 %s295, %s296
      %s298 = smul.addr %s297, 8
      %s299 = scalar_lea.vmem %s1, %s298
      %s300 = smul.u32 8, %s22
      %s301 = smul.u32 8, %s22
      %p302 = scmp.lt.s32.totalorder %s21, 1
      %s303 = scalar_select %p302, %s21, 1
      %p304 = scmp.lt.s32.totalorder %s301, 7
      %s305 = scalar_select %p304, %s301, 7
      %s306 = smul.addr %s303, 8
      %s307 = sadd.s32 %s305, %s306
      %s308 = smul.addr %s307, 8
      %s309 = scalar_lea.vmem %s6, %s308
      %s310 = smul.u32 8, %s22
      %p312 = scmp.eq.s32.totalorder %s22, 0
      // Predicated region
      $region45: #{tpu_custom_call.1} parent=43 // pred_check
        %p313 = pneg %p312
      $region46: #{tpu_custom_call.1} parent=43 // pred_check_branch
        %315 = sbr.rel (%p313) target = $region48
      $region47: #{tpu_custom_call.1} parent=43 // pred_region
        %v316 = vld [vmem:[%s290] sm:$0xff]
        %v317 = vld [vmem:[%s290 + $0x8] sm:$0xff]
        %v318 = vld [vmem:[%s290 + $0x10] sm:$0xff]
        %v319 = vld [vmem:[%s290 + $0x18] sm:$0xff]
        %v320 = vld [vmem:[%s290 + $0x20] sm:$0xff]
        %v321 = vld [vmem:[%s290 + $0x28] sm:$0xff]
        %v322 = vld [vmem:[%s290 + $0x30] sm:$0xff]
        %v323 = vld [vmem:[%s290 + $0x38] sm:$0xff]
        %v324 = vpack.c.bf16 %v317, %v316
        %v325 = vpack.c.bf16 %v319, %v318
        %v326 = vpack.c.bf16 %v321, %v320
        %v327 = vpack.c.bf16 %v323, %v322
        %v328 = vld [vmem:[%s2] sm:$0xf]
        %v329 = vld [vmem:[%s2 + $0x4] sm:$0xf]
        %v330 = vld [vmem:[%s2 + $0x8] sm:$0xf]
        %v331 = vld [vmem:[%s2 + $0xc] sm:$0xf]
        %v332 = vld [vmem:[%s3] sm:$0x1]
        %v334 = vlaneseq
        %v335 = vshrl.u32 %v334, 7
        %v336 = vsub.s32 0, %v335
        %v337 = vrot.slane %v332, %v336
        %v343 = vunpack.c.l.b16 %v328
        %v344 = vunpack.c.l.b16 %v329
        %v345 = vunpack.c.l.b16 %v330
        %v346 = vunpack.c.l.b16 %v331
        %v347 = vpack.c.b16 %v344, %v343
        %v348 = vpack.c.b16 %v346, %v345
        %vm351 = vcmask 261120
        %v353 = vsel %vm351, %v324, 0
        %v356 = vsel %vm351, %v325, 0
        %v359 = vsel %vm351, %v326, 0
        %v362 = vsel %vm351, %v327, 0
        %364 = vmatprep.subr.bf16.mxu0 0
        %365 = vmatpush1.bf16.msra.mxu0 0
        %366 = vmatprep.subr.bf16.mxu0 0
        %367 = vmatpush1.bf16.msra.mxu0 0
        %368 = vmatprep.subr.bf16.mxu0 0
        %369 = vmatpush1.bf16.msra.mxu0 0
        %370 = vmatprep.subr.bf16.mxu0 0
        %371 = vmatpush1.bf16.msra.mxu0 0
        %372 = vmatprep.subr.bf16.mxu0 0
        %373 = vmatpush1.bf16.msra.mxu0 0
        %374 = vmatprep.subr.bf16.mxu0 0
        %375 = vmatpush1.bf16.msra.mxu0 0
        %376 = vmatprep.subr.bf16.mxu0 0
        %377 = vmatpush1.bf16.msra.mxu0 %v348
        %378 = vmatprep.subr.bf16.mxu0 0
        %379 = vmatpush1.bf16.msra.mxu0 %v347
        %380 = vmatprep.subr.bf16.mxu0 0
        %381 = vmatpush2.bf16.msra.mxu0 0
        %382 = vmatprep.subr.bf16.mxu0 0
        %383 = vmatpush2.bf16.msra.mxu0 0
        %384 = vmatprep.subr.bf16.mxu0 0
        %385 = vmatpush2.bf16.msra.mxu0 0
        %386 = vmatprep.subr.bf16.mxu0 0
        %387 = vmatpush2.bf16.msra.mxu0 0
        %388 = vmatprep.subr.bf16.mxu0 0
        %389 = vmatpush2.bf16.msra.mxu0 0
        %390 = vmatprep.subr.bf16.mxu0 0
        %391 = vmatpush2.bf16.msra.mxu0 0
        %392 = vmatprep.subr.bf16.mxu0 0
        %393 = vmatpush2.bf16.msra.mxu0 0
        %394 = vmatprep.subr.bf16.mxu0 0
        %395 = vmatpush2.bf16.msra.mxu0 0
        %396 = vmatprep.mubr.bf16.mxu0 0
        %397 = vmatmul.mubr.bf16.gmra.mxu0 %v353
        %v398 = vpop.f32.mrf.mxu0
        %v399 = vadd.f32 %v337, %v398
        %v400 = vpop.f32.mrf.mxu0
        %v401 = vpop.f32.mrf.mxu0
        %v402 = vadd.f32 %v337, %v401
        %v403 = vpop.f32.mrf.mxu0
        %404 = vmatprep.mubr.bf16.mxu0 0
        %405 = vmatmul.mubr.bf16.gmra.mxu0 %v356
        %v406 = vpop.f32.mrf.mxu0
        %v407 = vadd.f32 %v337, %v406
        %v408 = vpop.f32.mrf.mxu0
        %v409 = vpop.f32.mrf.mxu0
        %v410 = vadd.f32 %v337, %v409
        %v411 = vpop.f32.mrf.mxu0
        %412 = vmatprep.mubr.bf16.mxu0 0
        %413 = vmatmul.mubr.bf16.gmra.mxu0 %v359
        %v414 = vpop.f32.mrf.mxu0
        %v415 = vadd.f32 %v337, %v414
        %v416 = vpop.f32.mrf.mxu0
        %v417 = vpop.f32.mrf.mxu0
        %v418 = vadd.f32 %v337, %v417
        %v419 = vpop.f32.mrf.mxu0
        %420 = vmatprep.mubr.bf16.mxu0 0
        %421 = vmatmul.mubr.bf16.gmra.mxu0 %v362
        %v422 = vpop.f32.mrf.mxu0
        %v423 = vadd.f32 %v337, %v422
        %v424 = vpop.f32.mrf.mxu0
        %v425 = vpop.f32.mrf.mxu0
        %v426 = vadd.f32 %v337, %v425
        %v427 = vpop.f32.mrf.mxu0
        %428 = vdwg.mxu0
        %v429 = vxor.u32 %v399, 2147483648
        %v430 = vxor.u32 %v402, 2147483648
        %v431 = vxor.u32 %v407, 2147483648
        %v432 = vxor.u32 %v410, 2147483648
        %v433 = vxor.u32 %v415, 2147483648
        %v434 = vxor.u32 %v418, 2147483648
        %v435 = vxor.u32 %v423, 2147483648
        %v436 = vxor.u32 %v426, 2147483648
        %v437 = vmul.f32 %v429, 1.442695
        %v438 = vpow.pop %v437
        %v439 = vmul.f32 %v430, 1.442695
        %v440 = vpow.pop %v439
        %v441 = vmul.f32 %v431, 1.442695
        %v442 = vpow.pop %v441
        %v443 = vmul.f32 %v432, 1.442695
        %v444 = vpow.pop %v443
        %v445 = vmul.f32 %v433, 1.442695
        %v446 = vpow.pop %v445
        %v447 = vmul.f32 %v434, 1.442695
        %v448 = vpow.pop %v447
        %v449 = vmul.f32 %v435, 1.442695
        %v450 = vpow.pop %v449
        %v451 = vmul.f32 %v436, 1.442695
        %v452 = vpow.pop %v451
        %v453 = vadd.f32 %v438, 1.0
        %v454 = vadd.f32 %v440, 1.0
        %v455 = vadd.f32 %v442, 1.0
        %v456 = vadd.f32 %v444, 1.0
        %v457 = vadd.f32 %v446, 1.0
        %v458 = vadd.f32 %v448, 1.0
        %v459 = vadd.f32 %v450, 1.0
        %v460 = vadd.f32 %v452, 1.0
        %v461 = vrcp.pop %v453
        %v462 = vmul.f32 1.0, %v461
        %v463 = vrcp.pop %v454
        %v464 = vmul.f32 1.0, %v463
        %v465 = vrcp.pop %v455
        %v466 = vmul.f32 1.0, %v465
        %v467 = vrcp.pop %v456
        %v468 = vmul.f32 1.0, %v467
        %v469 = vrcp.pop %v457
        %v470 = vmul.f32 1.0, %v469
        %v471 = vrcp.pop %v458
        %v472 = vmul.f32 1.0, %v471
        %v473 = vrcp.pop %v459
        %v474 = vmul.f32 1.0, %v473
        %v475 = vrcp.pop %v460
        %v476 = vmul.f32 1.0, %v475
        %v477 = vmul.f32 %v399, %v462
        %v478 = vmul.f32 %v402, %v464
        %v479 = vmul.f32 %v407, %v466
        %v480 = vmul.f32 %v410, %v468
        %v481 = vmul.f32 %v415, %v470
        %v482 = vmul.f32 %v418, %v472
        %v483 = vmul.f32 %v423, %v474
        %v484 = vmul.f32 %v426, %v476
        %v485 = vpack.c.bf16 %v478, %v477
        %v486 = vpack.c.bf16 %v480, %v479
        %v487 = vpack.c.bf16 %v482, %v481
        %v488 = vpack.c.bf16 %v484, %v483
        %v489 = vld [vmem:[%s4] sm:$0xf]
        %v490 = vld [vmem:[%s4 + $0x4] sm:$0xf]
        %v491 = vld [vmem:[%s4 + $0x8] sm:$0xf]
        %v492 = vld [vmem:[%s4 + $0xc] sm:$0xf]
        %v493 = vld [vmem:[%s5] sm:$0x1]
        %v495 = vlaneseq
        %v496 = vshrl.u32 %v495, 7
        %v497 = vsub.s32 0, %v496
        %v498 = vrot.slane %v493, %v497
        %v504 = vunpack.c.l.b16 %v489
        %v505 = vunpack.c.l.b16 %v490
        %v506 = vunpack.c.l.b16 %v491
        %v507 = vunpack.c.l.b16 %v492
        %v508 = vpack.c.b16 %v505, %v504
        %v509 = vpack.c.b16 %v507, %v506
        %v513 = vsel %vm351, %v485, 0
        %v516 = vsel %vm351, %v486, 0
        %v519 = vsel %vm351, %v487, 0
        %v522 = vsel %vm351, %v488, 0
        %524 = vmatprep.subr.bf16.mxu0 0
        %525 = vmatpush1.bf16.msra.mxu0 0
        %526 = vmatprep.subr.bf16.mxu0 0
        %527 = vmatpush1.bf16.msra.mxu0 0
        %528 = vmatprep.subr.bf16.mxu0 0
        %529 = vmatpush1.bf16.msra.mxu0 0
        %530 = vmatprep.subr.bf16.mxu0 0
        %531 = vmatpush1.bf16.msra.mxu0 0
        %532 = vmatprep.subr.bf16.mxu0 0
        %533 = vmatpush1.bf16.msra.mxu0 0
        %534 = vmatprep.subr.bf16.mxu0 0
        %535 = vmatpush1.bf16.msra.mxu0 0
        %536 = vmatprep.subr.bf16.mxu0 0
        %537 = vmatpush1.bf16.msra.mxu0 %v509
        %538 = vmatprep.subr.bf16.mxu0 0
        %539 = vmatpush1.bf16.msra.mxu0 %v508
        %540 = vmatprep.subr.bf16.mxu0 0
        %541 = vmatpush2.bf16.msra.mxu0 0
        %542 = vmatprep.subr.bf16.mxu0 0
        %543 = vmatpush2.bf16.msra.mxu0 0
        %544 = vmatprep.subr.bf16.mxu0 0
        %545 = vmatpush2.bf16.msra.mxu0 0
        %546 = vmatprep.subr.bf16.mxu0 0
        %547 = vmatpush2.bf16.msra.mxu0 0
        %548 = vmatprep.subr.bf16.mxu0 0
        %549 = vmatpush2.bf16.msra.mxu0 0
        %550 = vmatprep.subr.bf16.mxu0 0
        %551 = vmatpush2.bf16.msra.mxu0 0
        %552 = vmatprep.subr.bf16.mxu0 0
        %553 = vmatpush2.bf16.msra.mxu0 0
        %554 = vmatprep.subr.bf16.mxu0 0
        %555 = vmatpush2.bf16.msra.mxu0 0
        %556 = vmatprep.mubr.bf16.mxu0 0
        %557 = vmatmul.mubr.bf16.gmra.mxu0 %v513
        %v558 = vpop.f32.mrf.mxu0
        %v559 = vadd.f32 %v498, %v558
        %v560 = vpop.f32.mrf.mxu0
        %v561 = vpop.f32.mrf.mxu0
        %v562 = vadd.f32 %v498, %v561
        %v563 = vpop.f32.mrf.mxu0
        %564 = vmatprep.mubr.bf16.mxu0 0
        %565 = vmatmul.mubr.bf16.gmra.mxu0 %v516
        %v566 = vpop.f32.mrf.mxu0
        %v567 = vadd.f32 %v498, %v566
        %v568 = vpop.f32.mrf.mxu0
        %v569 = vpop.f32.mrf.mxu0
        %v570 = vadd.f32 %v498, %v569
        %v571 = vpop.f32.mrf.mxu0
        %572 = vmatprep.mubr.bf16.mxu0 0
        %573 = vmatmul.mubr.bf16.gmra.mxu0 %v519
        %v574 = vpop.f32.mrf.mxu0
        %v575 = vadd.f32 %v498, %v574
        %v576 = vpop.f32.mrf.mxu0
        %v577 = vpop.f32.mrf.mxu0
        %v578 = vadd.f32 %v498, %v577
        %v579 = vpop.f32.mrf.mxu0
        %580 = vmatprep.mubr.bf16.mxu0 0
        %581 = vmatmul.mubr.bf16.gmra.mxu0 %v522
        %v582 = vpop.f32.mrf.mxu0
        %v583 = vadd.f32 %v498, %v582
        %v584 = vpop.f32.mrf.mxu0
        %v585 = vpop.f32.mrf.mxu0
        %v586 = vadd.f32 %v498, %v585
        %v587 = vpop.f32.mrf.mxu0
        %588 = vdwg.mxu0
        %v589 = vpack.c.bf16 %v562, %v559
        %v590 = vpack.c.bf16 %v570, %v567
        %v591 = vpack.c.bf16 %v578, %v575
        %v592 = vpack.c.bf16 %v586, %v583
        %v597 = vunpack.c.l.b16 %v589
        %v598 = vunpack.c.h.b16 %v589
        %v599 = vunpack.c.l.b16 %v590
        %v600 = vunpack.c.h.b16 %v590
        %v601 = vunpack.c.l.b16 %v591
        %v602 = vunpack.c.h.b16 %v591
        %v603 = vunpack.c.l.b16 %v592
        %v604 = vunpack.c.h.b16 %v592
        %v605 = vpack.c.b16 %v597, %v597
        %v606 = vpack.c.b16 %v598, %v598
        %v607 = vpack.c.b16 %v599, %v599
        %v608 = vpack.c.b16 %v600, %v600
        %v609 = vpack.c.b16 %v601, %v601
        %v610 = vpack.c.b16 %v602, %v602
        %v611 = vpack.c.b16 %v603, %v603
        %v612 = vpack.c.b16 %v604, %v604
        %vm621 = vcmask 781312
        %622 = vst.msk [vmem:[#allocation2] sm:$0xf] %vm621, %v605
        %623 = vst.msk [vmem:[#allocation2 + $0x4] sm:$0xf] %vm621, %v606
        %624 = vst.msk [vmem:[#allocation2 + $0x8] sm:$0xf] %vm621, %v607
        %625 = vst.msk [vmem:[#allocation2 + $0xc] sm:$0xf] %vm621, %v608
        %626 = vst.msk [vmem:[#allocation2 + $0x10] sm:$0xf] %vm621, %v609
        %627 = vst.msk [vmem:[#allocation2 + $0x14] sm:$0xf] %vm621, %v610
        %628 = vst.msk [vmem:[#allocation2 + $0x18] sm:$0xf] %vm621, %v611
        %629 = vst.msk [vmem:[#allocation2 + $0x1c] sm:$0xf] %vm621, %v612
      $region48: #{tpu_custom_call.1} parent=43 // pred_fallthru
        _
      %s630 = smul.u32 %s22, 64
      %s631 = sshra.s32 %s630, 3
      %s632 = sand.u32 %s630, 7
      %s633 = smul.addr %s631, 4
      %s634 = scalar_lea.vmem [#allocation2], %s633
      %v635 = vld [vmem:[%s634] sm:$0xf]
      %v636 = vld [vmem:[%s634 + $0x4] sm:$0xf]
      %v637 = vld [vmem:[%s634 + $0x8] sm:$0xf]
      %v638 = vld [vmem:[%s634 + $0xc] sm:$0xf]
      %v639 = vld [vmem:[%s634 + $0x10] sm:$0xf]
      %v640 = vld [vmem:[%s634 + $0x14] sm:$0xf]
      %v641 = vld [vmem:[%s634 + $0x18] sm:$0xf]
      %v642 = vld [vmem:[%s634 + $0x1c] sm:$0xf]
      %v643 = vld [vmem:[#allocation2] sm:$0xf]
      %v644 = vld [vmem:[#allocation2 + $0x4] sm:$0xf]
      %v645 = vld [vmem:[#allocation2 + $0x8] sm:$0xf]
      %v646 = vld [vmem:[#allocation2 + $0xc] sm:$0xf]
      %v647 = vld [vmem:[#allocation2 + $0x10] sm:$0xf]
      %v648 = vld [vmem:[#allocation2 + $0x14] sm:$0xf]
      %v649 = vld [vmem:[#allocation2 + $0x18] sm:$0xf]
      %v650 = vld [vmem:[#allocation2 + $0x1c] sm:$0xf]
      %v659 = vunpack.c.l.b16 %v635
      %v660 = vunpack.c.l.b16 %v636
      %v661 = vunpack.c.l.b16 %v637
      %v662 = vunpack.c.l.b16 %v638
      %v663 = vunpack.c.l.b16 %v639
      %v664 = vunpack.c.l.b16 %v640
      %v665 = vunpack.c.l.b16 %v641
      %v666 = vunpack.c.l.b16 %v642
      %v667 = vpack.c.b16 %v660, %v659
      %v668 = vpack.c.b16 %v662, %v661
      %v669 = vpack.c.b16 %v664, %v663
      %v670 = vpack.c.b16 %v666, %v665
      %v679 = vunpack.c.l.b16 %v643
      %v680 = vunpack.c.l.b16 %v644
      %v681 = vunpack.c.l.b16 %v645
      %v682 = vunpack.c.l.b16 %v646
      %v683 = vunpack.c.l.b16 %v647
      %v684 = vunpack.c.l.b16 %v648
      %v685 = vunpack.c.l.b16 %v649
      %v686 = vunpack.c.l.b16 %v650
      %v687 = vpack.c.b16 %v680, %v679
      %v688 = vpack.c.b16 %v682, %v681
      %v689 = vpack.c.b16 %v684, %v683
      %v690 = vpack.c.b16 %v686, %v685
      %691 = vrot.lane.b32.xlu0 %v687, 96
      %v692 = vpop.permute.xlu0 %691
      %693 = vrot.lane.b32.xlu0 %v688, 96
      %v694 = vpop.permute.xlu0 %693
      %695 = vrot.lane.b32.xlu0 %v689, 96
      %v696 = vpop.permute.xlu0 %695
      %697 = vrot.lane.b32.xlu0 %v690, 96
      %v698 = vpop.permute.xlu0 %697
      %vm699 = vcmask 64512
      %v701 = vsel %vm699, %v667, 0
      %v704 = vsel %vm699, %v668, 0
      %v707 = vsel %vm699, %v669, 0
      %v710 = vsel %vm699, %v670, 0
      %v713 = vsel %vm699, %v692, 0
      %v716 = vsel %vm699, %v694, 0
      %v719 = vsel %vm699, %v696, 0
      %v722 = vsel %vm699, %v698, 0
      %724 = vmatprep.subr.bf16.mxu0 0
      %725 = vmatpush1.bf16.xpose.msra.mxu0 0
      %726 = vmatprep.subr.bf16.mxu0 0
      %727 = vmatpush1.bf16.xpose.msra.mxu0 0
      %728 = vmatprep.subr.bf16.mxu0 0
      %729 = vmatpush1.bf16.xpose.msra.mxu0 0
      %730 = vmatprep.subr.bf16.mxu0 0
      %731 = vmatpush1.bf16.xpose.msra.mxu0 0
      %732 = vmatprep.subr.bf16.mxu0 0
      %733 = vmatpush1.bf16.xpose.msra.mxu0 %v722
      %734 = vmatprep.subr.bf16.mxu0 0
      %735 = vmatpush1.bf16.xpose.msra.mxu0 %v719
      %736 = vmatprep.subr.bf16.mxu0 0
      %737 = vmatpush1.bf16.xpose.msra.mxu0 %v716
      %738 = vmatprep.subr.bf16.mxu0 0
      %739 = vmatpush1.bf16.xpose.msra.mxu0 %v713
      %740 = vmatprep.subr.bf16.mxu0 0
      %741 = vmatpush2.bf16.xpose.msra.mxu0 0
      %742 = vmatprep.subr.bf16.mxu0 0
      %743 = vmatpush2.bf16.xpose.msra.mxu0 0
      %744 = vmatprep.subr.bf16.mxu0 0
      %745 = vmatpush2.bf16.xpose.msra.mxu0 0
      %746 = vmatprep.subr.bf16.mxu0 0
      %747 = vmatpush2.bf16.xpose.msra.mxu0 0
      %748 = vmatprep.subr.bf16.mxu0 0
      %749 = vmatpush2.bf16.xpose.msra.mxu0 0
      %750 = vmatprep.subr.bf16.mxu0 0
      %751 = vmatpush2.bf16.xpose.msra.mxu0 0
      %752 = vmatprep.subr.bf16.mxu0 0
      %753 = vmatpush2.bf16.xpose.msra.mxu0 0
      %754 = vmatprep.subr.bf16.mxu0 0
      %755 = vmatpush2.bf16.xpose.msra.mxu0 0
      %756 = vmatprep.mubr.bf16.mxu0 0
      %757 = vmatmul.mubr.bf16.gmra.mxu0 %v701
      %v758 = vpop.f32.mrf.mxu0
      %v759 = vadd.f32 0.0, %v758
      %v760 = vpop.f32.mrf.mxu0
      %v761 = vpop.f32.mrf.mxu0
      %v762 = vadd.f32 0.0, %v761
      %v763 = vpop.f32.mrf.mxu0
      %764 = vmatprep.mubr.bf16.mxu0 0
      %765 = vmatmul.mubr.bf16.gmra.mxu0 %v704
      %v766 = vpop.f32.mrf.mxu0
      %v767 = vadd.f32 0.0, %v766
      %v768 = vpop.f32.mrf.mxu0
      %v769 = vpop.f32.mrf.mxu0
      %v770 = vadd.f32 0.0, %v769
      %v771 = vpop.f32.mrf.mxu0
      %772 = vmatprep.mubr.bf16.mxu0 0
      %773 = vmatmul.mubr.bf16.gmra.mxu0 %v707
      %v774 = vpop.f32.mrf.mxu0
      %v775 = vadd.f32 0.0, %v774
      %v776 = vpop.f32.mrf.mxu0
      %v777 = vpop.f32.mrf.mxu0
      %v778 = vadd.f32 0.0, %v777
      %v779 = vpop.f32.mrf.mxu0
      %780 = vmatprep.mubr.bf16.mxu0 0
      %781 = vmatmul.mubr.bf16.gmra.mxu0 %v710
      %v782 = vpop.f32.mrf.mxu0
      %v783 = vadd.f32 0.0, %v782
      %v784 = vpop.f32.mrf.mxu0
      %v785 = vpop.f32.mrf.mxu0
      %v786 = vadd.f32 0.0, %v785
      %v787 = vpop.f32.mrf.mxu0
      %788 = vdwg.mxu0
      %vm789 = vcmask 523264
      %v790 = vsel %vm789, %v759, -inf
      %791 = vmax.xlane.f32.xlu0 %v790
      %v792 = vpop.xlane.xlu0 %791
      %v793 = vsel %vm789, %v762, -inf
      %794 = vmax.xlane.f32.xlu0 %v793
      %v795 = vpop.xlane.xlu0 %794
      %v796 = vsel %vm789, %v767, -inf
      %797 = vmax.xlane.f32.xlu0 %v796
      %v798 = vpop.xlane.xlu0 %797
      %v799 = vsel %vm789, %v770, -inf
      %800 = vmax.xlane.f32.xlu0 %v799
      %v801 = vpop.xlane.xlu0 %800
      %v802 = vsel %vm789, %v775, -inf
      %803 = vmax.xlane.f32.xlu0 %v802
      %v804 = vpop.xlane.xlu0 %803
      %v805 = vsel %vm789, %v778, -inf
      %806 = vmax.xlane.f32.xlu0 %v805
      %v807 = vpop.xlane.xlu0 %806
      %v808 = vsel %vm789, %v783, -inf
      %809 = vmax.xlane.f32.xlu0 %v808
      %v810 = vpop.xlane.xlu0 %809
      %v811 = vsel %vm789, %v786, -inf
      %812 = vmax.xlane.f32.xlu0 %v811
      %v813 = vpop.xlane.xlu0 %812
      %v814 = vsub.f32 %v759, %v792
      %v815 = vsub.f32 %v762, %v795
      %v816 = vsub.f32 %v767, %v798
      %v817 = vsub.f32 %v770, %v801
      %v818 = vsub.f32 %v775, %v804
      %v819 = vsub.f32 %v778, %v807
      %v820 = vsub.f32 %v783, %v810
      %v821 = vsub.f32 %v786, %v813
      %v822 = vmul.f32 %v814, 1.442695
      %v823 = vpow.pop %v822
      %v824 = vmul.f32 %v815, 1.442695
      %v825 = vpow.pop %v824
      %v826 = vmul.f32 %v816, 1.442695
      %v827 = vpow.pop %v826
      %v828 = vmul.f32 %v817, 1.442695
      %v829 = vpow.pop %v828
      %v830 = vmul.f32 %v818, 1.442695
      %v831 = vpow.pop %v830
      %v832 = vmul.f32 %v819, 1.442695
      %v833 = vpow.pop %v832
      %v834 = vmul.f32 %v820, 1.442695
      %v835 = vpow.pop %v834
      %v836 = vmul.f32 %v821, 1.442695
      %v837 = vpow.pop %v836
      %v838 = vsel %vm789, %v823, 0.0
      %839 = vadd.xlane.f32.xlu0 %v838
      %v840 = vpop.xlane.xlu0 %839
      %v841 = vsel %vm789, %v825, 0.0
      %842 = vadd.xlane.f32.xlu0 %v841
      %v843 = vpop.xlane.xlu0 %842
      %v844 = vsel %vm789, %v827, 0.0
      %845 = vadd.xlane.f32.xlu0 %v844
      %v846 = vpop.xlane.xlu0 %845
      %v847 = vsel %vm789, %v829, 0.0
      %848 = vadd.xlane.f32.xlu0 %v847
      %v849 = vpop.xlane.xlu0 %848
      %v850 = vsel %vm789, %v831, 0.0
      %851 = vadd.xlane.f32.xlu0 %v850
      %v852 = vpop.xlane.xlu0 %851
      %v853 = vsel %vm789, %v833, 0.0
      %854 = vadd.xlane.f32.xlu0 %v853
      %v855 = vpop.xlane.xlu0 %854
      %v856 = vsel %vm789, %v835, 0.0
      %857 = vadd.xlane.f32.xlu0 %v856
      %v858 = vpop.xlane.xlu0 %857
      %v859 = vsel %vm789, %v837, 0.0
      %860 = vadd.xlane.f32.xlu0 %v859
      %v861 = vpop.xlane.xlu0 %860
      %v862 = vrcp.pop %v840
      %v863 = vrcp.pop %v843
      %v864 = vrcp.pop %v846
      %v865 = vrcp.pop %v849
      %v866 = vrcp.pop %v852
      %v867 = vrcp.pop %v855
      %v868 = vrcp.pop %v858
      %v869 = vrcp.pop %v861
      %v870 = vmul.f32 %v823, %v862
      %v871 = vmul.f32 %v825, %v863
      %v872 = vmul.f32 %v827, %v864
      %v873 = vmul.f32 %v829, %v865
      %v874 = vmul.f32 %v831, %v866
      %v875 = vmul.f32 %v833, %v867
      %v876 = vmul.f32 %v835, %v868
      %v877 = vmul.f32 %v837, %v869
      %v878 = vpack.c.bf16 %v871, %v870
      %v879 = vpack.c.bf16 %v873, %v872
      %v880 = vpack.c.bf16 %v875, %v874
      %v881 = vpack.c.bf16 %v877, %v876
      %882 = vrot.lane.b32.xlu0 %v687, 64
      %v883 = vpop.permute.xlu0 %882
      %884 = vrot.lane.b32.xlu0 %v688, 64
      %v885 = vpop.permute.xlu0 %884
      %886 = vrot.lane.b32.xlu0 %v689, 64
      %v887 = vpop.permute.xlu0 %886
      %888 = vrot.lane.b32.xlu0 %v690, 64
      %v889 = vpop.permute.xlu0 %888
      %v895 = vsel %vm789, %v878, 0
      %v898 = vsel %vm789, %v879, 0
      %v901 = vsel %vm789, %v880, 0
      %v904 = vsel %vm789, %v881, 0
      %906 = vmatprep.subr.bf16.mxu0 0
      %907 = vmatpush1.bf16.msra.mxu0 0
      %908 = vmatprep.subr.bf16.mxu0 0
      %909 = vmatpush1.bf16.msra.mxu0 0
      %910 = vmatprep.subr.bf16.mxu0 0
      %911 = vmatpush1.bf16.msra.mxu0 0
      %912 = vmatprep.subr.bf16.mxu0 0
      %913 = vmatpush1.bf16.msra.mxu0 0
      %914 = vmatprep.subr.bf16.mxu0 0
      %915 = vmatpush1.bf16.msra.mxu0 %v889
      %916 = vmatprep.subr.bf16.mxu0 0
      %917 = vmatpush1.bf16.msra.mxu0 %v887
      %918 = vmatprep.subr.bf16.mxu0 0
      %919 = vmatpush1.bf16.msra.mxu0 %v885
      %920 = vmatprep.subr.bf16.mxu0 0
      %921 = vmatpush1.bf16.msra.mxu0 %v883
      %922 = vmatprep.subr.bf16.mxu0 0
      %923 = vmatpush2.bf16.msra.mxu0 0
      %924 = vmatprep.subr.bf16.mxu0 0
      %925 = vmatpush2.bf16.msra.mxu0 0
      %926 = vmatprep.subr.bf16.mxu0 0
      %927 = vmatpush2.bf16.msra.mxu0 0
      %928 = vmatprep.subr.bf16.mxu0 0
      %929 = vmatpush2.bf16.msra.mxu0 0
      %930 = vmatprep.subr.bf16.mxu0 0
      %931 = vmatpush2.bf16.msra.mxu0 0
      %932 = vmatprep.subr.bf16.mxu0 0
      %933 = vmatpush2.bf16.msra.mxu0 0
      %934 = vmatprep.subr.bf16.mxu0 0
      %935 = vmatpush2.bf16.msra.mxu0 0
      %936 = vmatprep.subr.bf16.mxu0 0
      %937 = vmatpush2.bf16.msra.mxu0 0
      %938 = vmatprep.mubr.bf16.mxu0 0
      %939 = vmatmul.mubr.bf16.gmra.mxu0 %v895
      %v940 = vpop.f32.mrf.mxu0
      %v941 = vadd.f32 0.0, %v940
      %v942 = vpop.f32.mrf.mxu0
      %v943 = vpop.f32.mrf.mxu0
      %v944 = vadd.f32 0.0, %v943
      %v945 = vpop.f32.mrf.mxu0
      %946 = vmatprep.mubr.bf16.mxu0 0
      %947 = vmatmul.mubr.bf16.gmra.mxu0 %v898
      %v948 = vpop.f32.mrf.mxu0
      %v949 = vadd.f32 0.0, %v948
      %v950 = vpop.f32.mrf.mxu0
      %v951 = vpop.f32.mrf.mxu0
      %v952 = vadd.f32 0.0, %v951
      %v953 = vpop.f32.mrf.mxu0
      %954 = vmatprep.mubr.bf16.mxu0 0
      %955 = vmatmul.mubr.bf16.gmra.mxu0 %v901
      %v956 = vpop.f32.mrf.mxu0
      %v957 = vadd.f32 0.0, %v956
      %v958 = vpop.f32.mrf.mxu0
      %v959 = vpop.f32.mrf.mxu0
      %v960 = vadd.f32 0.0, %v959
      %v961 = vpop.f32.mrf.mxu0
      %962 = vmatprep.mubr.bf16.mxu0 0
      %963 = vmatmul.mubr.bf16.gmra.mxu0 %v904
      %v964 = vpop.f32.mrf.mxu0
      %v965 = vadd.f32 0.0, %v964
      %v966 = vpop.f32.mrf.mxu0
      %v967 = vpop.f32.mrf.mxu0
      %v968 = vadd.f32 0.0, %v967
      %v969 = vpop.f32.mrf.mxu0
      %970 = vdwg.mxu0
      %971 = vrot.lane.b32.xlu0 %v667, 120
      %v972 = vpop.permute.xlu0 %971
      %973 = vrot.lane.b32.xlu0 %v668, 120
      %v974 = vpop.permute.xlu0 %973
      %975 = vrot.lane.b32.xlu0 %v669, 120
      %v976 = vpop.permute.xlu0 %975
      %977 = vrot.lane.b32.xlu0 %v670, 120
      %v978 = vpop.permute.xlu0 %977
      %979 = vrot.lane.b32.xlu0 %v687, 88
      %v980 = vpop.permute.xlu0 %979
      %981 = vrot.lane.b32.xlu0 %v688, 88
      %v982 = vpop.permute.xlu0 %981
      %983 = vrot.lane.b32.xlu0 %v689, 88
      %v984 = vpop.permute.xlu0 %983
      %985 = vrot.lane.b32.xlu0 %v690, 88
      %v986 = vpop.permute.xlu0 %985
      %v988 = vsel %vm699, %v972, 0
      %v991 = vsel %vm699, %v974, 0
      %v994 = vsel %vm699, %v976, 0
      %v997 = vsel %vm699, %v978, 0
      %v1000 = vsel %vm699, %v980, 0
      %v1003 = vsel %vm699, %v982, 0
      %v1006 = vsel %vm699, %v984, 0
      %v1009 = vsel %vm699, %v986, 0
      %1011 = vmatprep.subr.bf16.mxu0 0
      %1012 = vmatpush1.bf16.xpose.msra.mxu0 0
      %1013 = vmatprep.subr.bf16.mxu0 0
      %1014 = vmatpush1.bf16.xpose.msra.mxu0 0
      %1015 = vmatprep.subr.bf16.mxu0 0
      %1016 = vmatpush1.bf16.xpose.msra.mxu0 0
      %1017 = vmatprep.subr.bf16.mxu0 0
      %1018 = vmatpush1.bf16.xpose.msra.mxu0 0
      %1019 = vmatprep.subr.bf16.mxu0 0
      %1020 = vmatpush1.bf16.xpose.msra.mxu0 %v1009
      %1021 = vmatprep.subr.bf16.mxu0 0
      %1022 = vmatpush1.bf16.xpose.msra.mxu0 %v1006
      %1023 = vmatprep.subr.bf16.mxu0 0
      %1024 = vmatpush1.bf16.xpose.msra.mxu0 %v1003
      %1025 = vmatprep.subr.bf16.mxu0 0
      %1026 = vmatpush1.bf16.xpose.msra.mxu0 %v1000
      %1027 = vmatprep.subr.bf16.mxu0 0
      %1028 = vmatpush2.bf16.xpose.msra.mxu0 0
      %1029 = vmatprep.subr.bf16.mxu0 0
      %1030 = vmatpush2.bf16.xpose.msra.mxu0 0
      %1031 = vmatprep.subr.bf16.mxu0 0
      %1032 = vmatpush2.bf16.xpose.msra.mxu0 0
      %1033 = vmatprep.subr.bf16.mxu0 0
      %1034 = vmatpush2.bf16.xpose.msra.mxu0 0
      %1035 = vmatprep.subr.bf16.mxu0 0
      %1036 = vmatpush2.bf16.xpose.msra.mxu0 0
      %1037 = vmatprep.subr.bf16.mxu0 0
      %1038 = vmatpush2.bf16.xpose.msra.mxu0 0
      %1039 = vmatprep.subr.bf16.mxu0 0
      %1040 = vmatpush2.bf16.xpose.msra.mxu0 0
      %1041 = vmatprep.subr.bf16.mxu0 0
      %1042 = vmatpush2.bf16.xpose.msra.mxu0 0
      %1043 = vmatprep.mubr.bf16.mxu0 0
      %1044 = vmatmul.mubr.bf16.gmra.mxu0 %v988
      %v1045 = vpop.f32.mrf.mxu0
      %v1046 = vadd.f32 0.0, %v1045
      %v1047 = vpop.f32.mrf.mxu0
      %v1048 = vpop.f32.mrf.mxu0
      %v1049 = vadd.f32 0.0, %v1048
      %v1050 = vpop.f32.mrf.mxu0
      %1051 = vmatprep.mubr.bf16.mxu0 0
      %1052 = vmatmul.mubr.bf16.gmra.mxu0 %v991
      %v1053 = vpop.f32.mrf.mxu0
      %v1054 = vadd.f32 0.0, %v1053
      %v1055 = vpop.f32.mrf.mxu0
      %v1056 = vpop.f32.mrf.mxu0
      %v1057 = vadd.f32 0.0, %v1056
      %v1058 = vpop.f32.mrf.mxu0
      %1059 = vmatprep.mubr.bf16.mxu0 0
      %1060 = vmatmul.mubr.bf16.gmra.mxu0 %v994
      %v1061 = vpop.f32.mrf.mxu0
      %v1062 = vadd.f32 0.0, %v1061
      %v1063 = vpop.f32.mrf.mxu0
      %v1064 = vpop.f32.mrf.mxu0
      %v1065 = vadd.f32 0.0, %v1064
      %v1066 = vpop.f32.mrf.mxu0
      %1067 = vmatprep.mubr.bf16.mxu0 0
      %1068 = vmatmul.mubr.bf16.gmra.mxu0 %v997
      %v1069 = vpop.f32.mrf.mxu0
      %v1070 = vadd.f32 0.0, %v1069
      %v1071 = vpop.f32.mrf.mxu0
      %v1072 = vpop.f32.mrf.mxu0
      %v1073 = vadd.f32 0.0, %v1072
      %v1074 = vpop.f32.mrf.mxu0
      %1075 = vdwg.mxu0
      %v1076 = vsel %vm789, %v1046, -inf
      %1077 = vmax.xlane.f32.xlu0 %v1076
      %v1078 = vpop.xlane.xlu0 %1077
      %v1079 = vsel %vm789, %v1049, -inf
      %1080 = vmax.xlane.f32.xlu0 %v1079
      %v1081 = vpop.xlane.xlu0 %1080
      %v1082 = vsel %vm789, %v1054, -inf
      %1083 = vmax.xlane.f32.xlu0 %v1082
      %v1084 = vpop.xlane.xlu0 %1083
      %v1085 = vsel %vm789, %v1057, -inf
      %1086 = vmax.xlane.f32.xlu0 %v1085
      %v1087 = vpop.xlane.xlu0 %1086
      %v1088 = vsel %vm789, %v1062, -inf
      %1089 = vmax.xlane.f32.xlu0 %v1088
      %v1090 = vpop.xlane.xlu0 %1089
      %v1091 = vsel %vm789, %v1065, -inf
      %1092 = vmax.xlane.f32.xlu0 %v1091
      %v1093 = vpop.xlane.xlu0 %1092
      %v1094 = vsel %vm789, %v1070, -inf
      %1095 = vmax.xlane.f32.xlu0 %v1094
      %v1096 = vpop.xlane.xlu0 %1095
      %v1097 = vsel %vm789, %v1073, -inf
      %1098 = vmax.xlane.f32.xlu0 %v1097
      %v1099 = vpop.xlane.xlu0 %1098
      %v1100 = vsub.f32 %v1046, %v1078
      %v1101 = vsub.f32 %v1049, %v1081
      %v1102 = vsub.f32 %v1054, %v1084
      %v1103 = vsub.f32 %v1057, %v1087
      %v1104 = vsub.f32 %v1062, %v1090
      %v1105 = vsub.f32 %v1065, %v1093
      %v1106 = vsub.f32 %v1070, %v1096
      %v1107 = vsub.f32 %v1073, %v1099
      %v1108 = vmul.f32 %v1100, 1.442695
      %v1109 = vpow.pop %v1108
      %v1110 = vmul.f32 %v1101, 1.442695
      %v1111 = vpow.pop %v1110
      %v1112 = vmul.f32 %v1102, 1.442695
      %v1113 = vpow.pop %v1112
      %v1114 = vmul.f32 %v1103, 1.442695
      %v1115 = vpow.pop %v1114
      %v1116 = vmul.f32 %v1104, 1.442695
      %v1117 = vpow.pop %v1116
      %v1118 = vmul.f32 %v1105, 1.442695
      %v1119 = vpow.pop %v1118
      %v1120 = vmul.f32 %v1106, 1.442695
      %v1121 = vpow.pop %v1120
      %v1122 = vmul.f32 %v1107, 1.442695
      %v1123 = vpow.pop %v1122
      %v1124 = vsel %vm789, %v1109, 0.0
      %1125 = vadd.xlane.f32.xlu0 %v1124
      %v1126 = vpop.xlane.xlu0 %1125
      %v1127 = vsel %vm789, %v1111, 0.0
      %1128 = vadd.xlane.f32.xlu0 %v1127
      %v1129 = vpop.xlane.xlu0 %1128
      %v1130 = vsel %vm789, %v1113, 0.0
      %1131 = vadd.xlane.f32.xlu0 %v1130
      %v1132 = vpop.xlane.xlu0 %1131
      %v1133 = vsel %vm789, %v1115, 0.0
      %1134 = vadd.xlane.f32.xlu0 %v1133
      %v1135 = vpop.xlane.xlu0 %1134
      %v1136 = vsel %vm789, %v1117, 0.0
      %1137 = vadd.xlane.f32.xlu0 %v1136
      %v1138 = vpop.xlane.xlu0 %1137
      %v1139 = vsel %vm789, %v1119, 0.0
      %1140 = vadd.xlane.f32.xlu0 %v1139
      %v1141 = vpop.xlane.xlu0 %1140
      %v1142 = vsel %vm789, %v1121, 0.0
      %1143 = vadd.xlane.f32.xlu0 %v1142
      %v1144 = vpop.xlane.xlu0 %1143
      %v1145 = vsel %vm789, %v1123, 0.0
      %1146 = vadd.xlane.f32.xlu0 %v1145
      %v1147 = vpop.xlane.xlu0 %1146
      %v1148 = vrcp.pop %v1126
      %v1149 = vrcp.pop %v1129
      %v1150 = vrcp.pop %v1132
      %v1151 = vrcp.pop %v1135
      %v1152 = vrcp.pop %v1138
      %v1153 = vrcp.pop %v1141
      %v1154 = vrcp.pop %v1144
      %v1155 = vrcp.pop %v1147
      %v1156 = vmul.f32 %v1109, %v1148
      %v1157 = vmul.f32 %v1111, %v1149
      %v1158 = vmul.f32 %v1113, %v1150
      %v1159 = vmul.f32 %v1115, %v1151
      %v1160 = vmul.f32 %v1117, %v1152
      %v1161 = vmul.f32 %v1119, %v1153
      %v1162 = vmul.f32 %v1121, %v1154
      %v1163 = vmul.f32 %v1123, %v1155
      %v1164 = vpack.c.bf16 %v1157, %v1156
      %v1165 = vpack.c.bf16 %v1159, %v1158
      %v1166 = vpack.c.bf16 %v1161, %v1160
      %v1167 = vpack.c.bf16 %v1163, %v1162
      %1168 = vrot.lane.b32.xlu0 %v687, 56
      %v1169 = vpop.permute.xlu0 %1168
      %1170 = vrot.lane.b32.xlu0 %v688, 56
      %v1171 = vpop.permute.xlu0 %1170
      %1172 = vrot.lane.b32.xlu0 %v689, 56
      %v1173 = vpop.permute.xlu0 %1172
      %1174 = vrot.lane.b32.xlu0 %v690, 56
      %v1175 = vpop.permute.xlu0 %1174
      %v1181 = vsel %vm789, %v1164, 0
      %v1184 = vsel %vm789, %v1165, 0
      %v1187 = vsel %vm789, %v1166, 0
      %v1190 = vsel %vm789, %v1167, 0
      %1192 = vmatprep.subr.bf16.mxu0 0
      %1193 = vmatpush1.bf16.msra.mxu0 0
      %1194 = vmatprep.subr.bf16.mxu0 0
      %1195 = vmatpush1.bf16.msra.mxu0 0
      %1196 = vmatprep.subr.bf16.mxu0 0
      %1197 = vmatpush1.bf16.msra.mxu0 0
      %1198 = vmatprep.subr.bf16.mxu0 0
      %1199 = vmatpush1.bf16.msra.mxu0 0
      %1200 = vmatprep.subr.bf16.mxu0 0
      %1201 = vmatpush1.bf16.msra.mxu0 %v1175
      %1202 = vmatprep.subr.bf16.mxu0 0
      %1203 = vmatpush1.bf16.msra.mxu0 %v1173
      %1204 = vmatprep.subr.bf16.mxu0 0
      %1205 = vmatpush1.bf16.msra.mxu0 %v1171
      %1206 = vmatprep.subr.bf16.mxu0 0
      %1207 = vmatpush1.bf16.msra.mxu0 %v1169
      %1208 = vmatprep.subr.bf16.mxu0 0
      %1209 = vmatpush2.bf16.msra.mxu0 0
      %1210 = vmatprep.subr.bf16.mxu0 0
      %1211 = vmatpush2.bf16.msra.mxu0 0
      %1212 = vmatprep.subr.bf16.mxu0 0
      %1213 = vmatpush2.bf16.msra.mxu0 0
      %1214 = vmatprep.subr.bf16.mxu0 0
      %1215 = vmatpush2.bf16.msra.mxu0 0
      %1216 = vmatprep.subr.bf16.mxu0 0
      %1217 = vmatpush2.bf16.msra.mxu0 0
      %1218 = vmatprep.subr.bf16.mxu0 0
      %1219 = vmatpush2.bf16.msra.mxu0 0
      %1220 = vmatprep.subr.bf16.mxu0 0
      %1221 = vmatpush2.bf16.msra.mxu0 0
      %1222 = vmatprep.subr.bf16.mxu0 0
      %1223 = vmatpush2.bf16.msra.mxu0 0
      %1224 = vmatprep.mubr.bf16.mxu0 0
      %1225 = vmatmul.mubr.bf16.gmra.mxu0 %v1181
      %v1226 = vpop.f32.mrf.mxu0
      %v1227 = vadd.f32 0.0, %v1226
      %v1228 = vpop.f32.mrf.mxu0
      %v1229 = vpop.f32.mrf.mxu0
      %v1230 = vadd.f32 0.0, %v1229
      %v1231 = vpop.f32.mrf.mxu0
      %1232 = vmatprep.mubr.bf16.mxu0 0
      %1233 = vmatmul.mubr.bf16.gmra.mxu0 %v1184
      %v1234 = vpop.f32.mrf.mxu0
      %v1235 = vadd.f32 0.0, %v1234
      %v1236 = vpop.f32.mrf.mxu0
      %v1237 = vpop.f32.mrf.mxu0
      %v1238 = vadd.f32 0.0, %v1237
      %v1239 = vpop.f32.mrf.mxu0
      %1240 = vmatprep.mubr.bf16.mxu0 0
      %1241 = vmatmul.mubr.bf16.gmra.mxu0 %v1187
      %v1242 = vpop.f32.mrf.mxu0
      %v1243 = vadd.f32 0.0, %v1242
      %v1244 = vpop.f32.mrf.mxu0
      %v1245 = vpop.f32.mrf.mxu0
      %v1246 = vadd.f32 0.0, %v1245
      %v1247 = vpop.f32.mrf.mxu0
      %1248 = vmatprep.mubr.bf16.mxu0 0
      %1249 = vmatmul.mubr.bf16.gmra.mxu0 %v1190
      %v1250 = vpop.f32.mrf.mxu0
      %v1251 = vadd.f32 0.0, %v1250
      %v1252 = vpop.f32.mrf.mxu0
      %v1253 = vpop.f32.mrf.mxu0
      %v1254 = vadd.f32 0.0, %v1253
      %v1255 = vpop.f32.mrf.mxu0
      %1256 = vdwg.mxu0
      %1257 = vrot.lane.b32.xlu0 %v667, 112
      %v1258 = vpop.permute.xlu0 %1257
      %1259 = vrot.lane.b32.xlu0 %v668, 112
      %v1260 = vpop.permute.xlu0 %1259
      %1261 = vrot.lane.b32.xlu0 %v669, 112
      %v1262 = vpop.permute.xlu0 %1261
      %1263 = vrot.lane.b32.xlu0 %v670, 112
      %v1264 = vpop.permute.xlu0 %1263
      %1265 = vrot.lane.b32.xlu0 %v687, 80
      %v1266 = vpop.permute.xlu0 %1265
      %1267 = vrot.lane.b32.xlu0 %v688, 80
      %v1268 = vpop.permute.xlu0 %1267
      %1269 = vrot.lane.b32.xlu0 %v689, 80
      %v1270 = vpop.permute.xlu0 %1269
      %1271 = vrot.lane.b32.xlu0 %v690, 80
      %v1272 = vpop.permute.xlu0 %1271
      %v1274 = vsel %vm699, %v1258, 0
      %v1277 = vsel %vm699, %v1260, 0
      %v1280 = vsel %vm699, %v1262, 0
      %v1283 = vsel %vm699, %v1264, 0
      %v1286 = vsel %vm699, %v1266, 0
      %v1289 = vsel %vm699, %v1268, 0
      %v1292 = vsel %vm699, %v1270, 0
      %v1295 = vsel %vm699, %v1272, 0
      %1297 = vmatprep.subr.bf16.mxu0 0
      %1298 = vmatpush1.bf16.xpose.msra.mxu0 0
      %1299 = vmatprep.subr.bf16.mxu0 0
      %1300 = vmatpush1.bf16.xpose.msra.mxu0 0
      %1301 = vmatprep.subr.bf16.mxu0 0
      %1302 = vmatpush1.bf16.xpose.msra.mxu0 0
      %1303 = vmatprep.subr.bf16.mxu0 0
      %1304 = vmatpush1.bf16.xpose.msra.mxu0 0
      %1305 = vmatprep.subr.bf16.mxu0 0
      %1306 = vmatpush1.bf16.xpose.msra.mxu0 %v1295
      %1307 = vmatprep.subr.bf16.mxu0 0
      %1308 = vmatpush1.bf16.xpose.msra.mxu0 %v1292
      %1309 = vmatprep.subr.bf16.mxu0 0
      %1310 = vmatpush1.bf16.xpose.msra.mxu0 %v1289
      %1311 = vmatprep.subr.bf16.mxu0 0
      %1312 = vmatpush1.bf16.xpose.msra.mxu0 %v1286
      %1313 = vmatprep.subr.bf16.mxu0 0
      %1314 = vmatpush2.bf16.xpose.msra.mxu0 0
      %1315 = vmatprep.subr.bf16.mxu0 0
      %1316 = vmatpush2.bf16.xpose.msra.mxu0 0
      %1317 = vmatprep.subr.bf16.mxu0 0
      %1318 = vmatpush2.bf16.xpose.msra.mxu0 0
      %1319 = vmatprep.subr.bf16.mxu0 0
      %1320 = vmatpush2.bf16.xpose.msra.mxu0 0
      %1321 = vmatprep.subr.bf16.mxu0 0
      %1322 = vmatpush2.bf16.xpose.msra.mxu0 0
      %1323 = vmatprep.subr.bf16.mxu0 0
      %1324 = vmatpush2.bf16.xpose.msra.mxu0 0
      %1325 = vmatprep.subr.bf16.mxu0 0
      %1326 = vmatpush2.bf16.xpose.msra.mxu0 0
      %1327 = vmatprep.subr.bf16.mxu0 0
      %1328 = vmatpush2.bf16.xpose.msra.mxu0 0
      %1329 = vmatprep.mubr.bf16.mxu0 0
      %1330 = vmatmul.mubr.bf16.gmra.mxu0 %v1274
      %v1331 = vpop.f32.mrf.mxu0
      %v1332 = vadd.f32 0.0, %v1331
      %v1333 = vpop.f32.mrf.mxu0
      %v1334 = vpop.f32.mrf.mxu0
      %v1335 = vadd.f32 0.0, %v1334
      %v1336 = vpop.f32.mrf.mxu0
      %1337 = vmatprep.mubr.bf16.mxu0 0
      %1338 = vmatmul.mubr.bf16.gmra.mxu0 %v1277
      %v1339 = vpop.f32.mrf.mxu0
      %v1340 = vadd.f32 0.0, %v1339
      %v1341 = vpop.f32.mrf.mxu0
      %v1342 = vpop.f32.mrf.mxu0
      %v1343 = vadd.f32 0.0, %v1342
      %v1344 = vpop.f32.mrf.mxu0
      %1345 = vmatprep.mubr.bf16.mxu0 0
      %1346 = vmatmul.mubr.bf16.gmra.mxu0 %v1280
      %v1347 = vpop.f32.mrf.mxu0
      %v1348 = vadd.f32 0.0, %v1347
      %v1349 = vpop.f32.mrf.mxu0
      %v1350 = vpop.f32.mrf.mxu0
      %v1351 = vadd.f32 0.0, %v1350
      %v1352 = vpop.f32.mrf.mxu0
      %1353 = vmatprep.mubr.bf16.mxu0 0
      %1354 = vmatmul.mubr.bf16.gmra.mxu0 %v1283
      %v1355 = vpop.f32.mrf.mxu0
      %v1356 = vadd.f32 0.0, %v1355
      %v1357 = vpop.f32.mrf.mxu0
      %v1358 = vpop.f32.mrf.mxu0
      %v1359 = vadd.f32 0.0, %v1358
      %v1360 = vpop.f32.mrf.mxu0
      %1361 = vdwg.mxu0
      %v1362 = vsel %vm789, %v1332, -inf
      %1363 = vmax.xlane.f32.xlu0 %v1362
      %v1364 = vpop.xlane.xlu0 %1363
      %v1365 = vsel %vm789, %v1335, -inf
      %1366 = vmax.xlane.f32.xlu0 %v1365
      %v1367 = vpop.xlane.xlu0 %1366
      %v1368 = vsel %vm789, %v1340, -inf
      %1369 = vmax.xlane.f32.xlu0 %v1368
      %v1370 = vpop.xlane.xlu0 %1369
      %v1371 = vsel %vm789, %v1343, -inf
      %1372 = vmax.xlane.f32.xlu0 %v1371
      %v1373 = vpop.xlane.xlu0 %1372
      %v1374 = vsel %vm789, %v1348, -inf
      %1375 = vmax.xlane.f32.xlu0 %v1374
      %v1376 = vpop.xlane.xlu0 %1375
      %v1377 = vsel %vm789, %v1351, -inf
      %1378 = vmax.xlane.f32.xlu0 %v1377
      %v1379 = vpop.xlane.xlu0 %1378
      %v1380 = vsel %vm789, %v1356, -inf
      %1381 = vmax.xlane.f32.xlu0 %v1380
      %v1382 = vpop.xlane.xlu0 %1381
      %v1383 = vsel %vm789, %v1359, -inf
      %1384 = vmax.xlane.f32.xlu0 %v1383
      %v1385 = vpop.xlane.xlu0 %1384
      %v1386 = vsub.f32 %v1332, %v1364
      %v1387 = vsub.f32 %v1335, %v1367
      %v1388 = vsub.f32 %v1340, %v1370
      %v1389 = vsub.f32 %v1343, %v1373
      %v1390 = vsub.f32 %v1348, %v1376
      %v1391 = vsub.f32 %v1351, %v1379
      %v1392 = vsub.f32 %v1356, %v1382
      %v1393 = vsub.f32 %v1359, %v1385
      %v1394 = vmul.f32 %v1386, 1.442695
      %v1395 = vpow.pop %v1394
      %v1396 = vmul.f32 %v1387, 1.442695
      %v1397 = vpow.pop %v1396
      %v1398 = vmul.f32 %v1388, 1.442695
      %v1399 = vpow.pop %v1398
      %v1400 = vmul.f32 %v1389, 1.442695
      %v1401 = vpow.pop %v1400
      %v1402 = vmul.f32 %v1390, 1.442695
      %v1403 = vpow.pop %v1402
      %v1404 = vmul.f32 %v1391, 1.442695
      %v1405 = vpow.pop %v1404
      %v1406 = vmul.f32 %v1392, 1.442695
      %v1407 = vpow.pop %v1406
      %v1408 = vmul.f32 %v1393, 1.442695
      %v1409 = vpow.pop %v1408
      %v1410 = vsel %vm789, %v1395, 0.0
      %1411 = vadd.xlane.f32.xlu0 %v1410
      %v1412 = vpop.xlane.xlu0 %1411
      %v1413 = vsel %vm789, %v1397, 0.0
      %1414 = vadd.xlane.f32.xlu0 %v1413
      %v1415 = vpop.xlane.xlu0 %1414
      %v1416 = vsel %vm789, %v1399, 0.0
      %1417 = vadd.xlane.f32.xlu0 %v1416
      %v1418 = vpop.xlane.xlu0 %1417
      %v1419 = vsel %vm789, %v1401, 0.0
      %1420 = vadd.xlane.f32.xlu0 %v1419
      %v1421 = vpop.xlane.xlu0 %1420
      %v1422 = vsel %vm789, %v1403, 0.0
      %1423 = vadd.xlane.f32.xlu0 %v1422
      %v1424 = vpop.xlane.xlu0 %1423
      %v1425 = vsel %vm789, %v1405, 0.0
      %1426 = vadd.xlane.f32.xlu0 %v1425
      %v1427 = vpop.xlane.xlu0 %1426
      %v1428 = vsel %vm789, %v1407, 0.0
      %1429 = vadd.xlane.f32.xlu0 %v1428
      %v1430 = vpop.xlane.xlu0 %1429
      %v1431 = vsel %vm789, %v1409, 0.0
      %1432 = vadd.xlane.f32.xlu0 %v1431
      %v1433 = vpop.xlane.xlu0 %1432
      %v1434 = vrcp.pop %v1412
      %v1435 = vrcp.pop %v1415
      %v1436 = vrcp.pop %v1418
      %v1437 = vrcp.pop %v1421
      %v1438 = vrcp.pop %v1424
      %v1439 = vrcp.pop %v1427
      %v1440 = vrcp.pop %v1430
      %v1441 = vrcp.pop %v1433
      %v1442 = vmul.f32 %v1395, %v1434
      %v1443 = vmul.f32 %v1397, %v1435
      %v1444 = vmul.f32 %v1399, %v1436
      %v1445 = vmul.f32 %v1401, %v1437
      %v1446 = vmul.f32 %v1403, %v1438
      %v1447 = vmul.f32 %v1405, %v1439
      %v1448 = vmul.f32 %v1407, %v1440
      %v1449 = vmul.f32 %v1409, %v1441
      %v1450 = vpack.c.bf16 %v1443, %v1442
      %v1451 = vpack.c.bf16 %v1445, %v1444
      %v1452 = vpack.c.bf16 %v1447, %v1446
      %v1453 = vpack.c.bf16 %v1449, %v1448
      %1454 = vrot.lane.b32.xlu0 %v687, 48
      %v1455 = vpop.permute.xlu0 %1454
      %1456 = vrot.lane.b32.xlu0 %v688, 48
      %v1457 = vpop.permute.xlu0 %1456
      %1458 = vrot.lane.b32.xlu0 %v689, 48
      %v1459 = vpop.permute.xlu0 %1458
      %1460 = vrot.lane.b32.xlu0 %v690, 48
      %v1461 = vpop.permute.xlu0 %1460
      %v1467 = vsel %vm789, %v1450, 0
      %v1470 = vsel %vm789, %v1451, 0
      %v1473 = vsel %vm789, %v1452, 0
      %v1476 = vsel %vm789, %v1453, 0
      %1478 = vmatprep.subr.bf16.mxu0 0
      %1479 = vmatpush1.bf16.msra.mxu0 0
      %1480 = vmatprep.subr.bf16.mxu0 0
      %1481 = vmatpush1.bf16.msra.mxu0 0
      %1482 = vmatprep.subr.bf16.mxu0 0
      %1483 = vmatpush1.bf16.msra.mxu0 0
      %1484 = vmatprep.subr.bf16.mxu0 0
      %1485 = vmatpush1.bf16.msra.mxu0 0
      %1486 = vmatprep.subr.bf16.mxu0 0
      %1487 = vmatpush1.bf16.msra.mxu0 %v1461
      %1488 = vmatprep.subr.bf16.mxu0 0
      %1489 = vmatpush1.bf16.msra.mxu0 %v1459
      %1490 = vmatprep.subr.bf16.mxu0 0
      %1491 = vmatpush1.bf16.msra.mxu0 %v1457
      %1492 = vmatprep.subr.bf16.mxu0 0
      %1493 = vmatpush1.bf16.msra.mxu0 %v1455
      %1494 = vmatprep.subr.bf16.mxu0 0
      %1495 = vmatpush2.bf16.msra.mxu0 0
      %1496 = vmatprep.subr.bf16.mxu0 0
      %1497 = vmatpush2.bf16.msra.mxu0 0
      %1498 = vmatprep.subr.bf16.mxu0 0
      %1499 = vmatpush2.bf16.msra.mxu0 0
      %1500 = vmatprep.subr.bf16.mxu0 0
      %1501 = vmatpush2.bf16.msra.mxu0 0
      %1502 = vmatprep.subr.bf16.mxu0 0
      %1503 = vmatpush2.bf16.msra.mxu0 0
      %1504 = vmatprep.subr.bf16.mxu0 0
      %1505 = vmatpush2.bf16.msra.mxu0 0
      %1506 = vmatprep.subr.bf16.mxu0 0
      %1507 = vmatpush2.bf16.msra.mxu0 0
      %1508 = vmatprep.subr.bf16.mxu0 0
      %1509 = vmatpush2.bf16.msra.mxu0 0
      %1510 = vmatprep.mubr.bf16.mxu0 0
      %1511 = vmatmul.mubr.bf16.gmra.mxu0 %v1467
      %v1512 = vpop.f32.mrf.mxu0
      %v1513 = vadd.f32 0.0, %v1512
      %v1514 = vpop.f32.mrf.mxu0
      %v1515 = vpop.f32.mrf.mxu0
      %v1516 = vadd.f32 0.0, %v1515
      %v1517 = vpop.f32.mrf.mxu0
      %1518 = vmatprep.mubr.bf16.mxu0 0
      %1519 = vmatmul.mubr.bf16.gmra.mxu0 %v1470
      %v1520 = vpop.f32.mrf.mxu0
      %v1521 = vadd.f32 0.0, %v1520
      %v1522 = vpop.f32.mrf.mxu0
      %v1523 = vpop.f32.mrf.mxu0
      %v1524 = vadd.f32 0.0, %v1523
      %v1525 = vpop.f32.mrf.mxu0
      %1526 = vmatprep.mubr.bf16.mxu0 0
      %1527 = vmatmul.mubr.bf16.gmra.mxu0 %v1473
      %v1528 = vpop.f32.mrf.mxu0
      %v1529 = vadd.f32 0.0, %v1528
      %v1530 = vpop.f32.mrf.mxu0
      %v1531 = vpop.f32.mrf.mxu0
      %v1532 = vadd.f32 0.0, %v1531
      %v1533 = vpop.f32.mrf.mxu0
      %1534 = vmatprep.mubr.bf16.mxu0 0
      %1535 = vmatmul.mubr.bf16.gmra.mxu0 %v1476
      %v1536 = vpop.f32.mrf.mxu0
      %v1537 = vadd.f32 0.0, %v1536
      %v1538 = vpop.f32.mrf.mxu0
      %v1539 = vpop.f32.mrf.mxu0
      %v1540 = vadd.f32 0.0, %v1539
      %v1541 = vpop.f32.mrf.mxu0
      %1542 = vdwg.mxu0
      %1543 = vrot.lane.b32.xlu0 %v667, 104
      %v1544 = vpop.permute.xlu0 %1543
      %1545 = vrot.lane.b32.xlu0 %v668, 104
      %v1546 = vpop.permute.xlu0 %1545
      %1547 = vrot.lane.b32.xlu0 %v669, 104
      %v1548 = vpop.permute.xlu0 %1547
      %1549 = vrot.lane.b32.xlu0 %v670, 104
      %v1550 = vpop.permute.xlu0 %1549
      %1551 = vrot.lane.b32.xlu0 %v687, 72
      %v1552 = vpop.permute.xlu0 %1551
      %1553 = vrot.lane.b32.xlu0 %v688, 72
      %v1554 = vpop.permute.xlu0 %1553
      %1555 = vrot.lane.b32.xlu0 %v689, 72
      %v1556 = vpop.permute.xlu0 %1555
      %1557 = vrot.lane.b32.xlu0 %v690, 72
      %v1558 = vpop.permute.xlu0 %1557
      %v1560 = vsel %vm699, %v1544, 0
      %v1563 = vsel %vm699, %v1546, 0
      %v1566 = vsel %vm699, %v1548, 0
      %v1569 = vsel %vm699, %v1550, 0
      %v1572 = vsel %vm699, %v1552, 0
      %v1575 = vsel %vm699, %v1554, 0
      %v1578 = vsel %vm699, %v1556, 0
      %v1581 = vsel %vm699, %v1558, 0
      %1583 = vmatprep.subr.bf16.mxu0 0
      %1584 = vmatpush1.bf16.xpose.msra.mxu0 0
      %1585 = vmatprep.subr.bf16.mxu0 0
      %1586 = vmatpush1.bf16.xpose.msra.mxu0 0
      %1587 = vmatprep.subr.bf16.mxu0 0
      %1588 = vmatpush1.bf16.xpose.msra.mxu0 0
      %1589 = vmatprep.subr.bf16.mxu0 0
      %1590 = vmatpush1.bf16.xpose.msra.mxu0 0
      %1591 = vmatprep.subr.bf16.mxu0 0
      %1592 = vmatpush1.bf16.xpose.msra.mxu0 %v1581
      %1593 = vmatprep.subr.bf16.mxu0 0
      %1594 = vmatpush1.bf16.xpose.msra.mxu0 %v1578
      %1595 = vmatprep.subr.bf16.mxu0 0
      %1596 = vmatpush1.bf16.xpose.msra.mxu0 %v1575
      %1597 = vmatprep.subr.bf16.mxu0 0
      %1598 = vmatpush1.bf16.xpose.msra.mxu0 %v1572
      %1599 = vmatprep.subr.bf16.mxu0 0
      %1600 = vmatpush2.bf16.xpose.msra.mxu0 0
      %1601 = vmatprep.subr.bf16.mxu0 0
      %1602 = vmatpush2.bf16.xpose.msra.mxu0 0
      %1603 = vmatprep.subr.bf16.mxu0 0
      %1604 = vmatpush2.bf16.xpose.msra.mxu0 0
      %1605 = vmatprep.subr.bf16.mxu0 0
      %1606 = vmatpush2.bf16.xpose.msra.mxu0 0
      %1607 = vmatprep.subr.bf16.mxu0 0
      %1608 = vmatpush2.bf16.xpose.msra.mxu0 0
      %1609 = vmatprep.subr.bf16.mxu0 0
      %1610 = vmatpush2.bf16.xpose.msra.mxu0 0
      %1611 = vmatprep.subr.bf16.mxu0 0
      %1612 = vmatpush2.bf16.xpose.msra.mxu0 0
      %1613 = vmatprep.subr.bf16.mxu0 0
      %1614 = vmatpush2.bf16.xpose.msra.mxu0 0
      %1615 = vmatprep.mubr.bf16.mxu0 0
      %1616 = vmatmul.mubr.bf16.gmra.mxu0 %v1560
      %v1617 = vpop.f32.mrf.mxu0
      %v1618 = vadd.f32 0.0, %v1617
      %v1619 = vpop.f32.mrf.mxu0
      %v1620 = vpop.f32.mrf.mxu0
      %v1621 = vadd.f32 0.0, %v1620
      %v1622 = vpop.f32.mrf.mxu0
      %1623 = vmatprep.mubr.bf16.mxu0 0
      %1624 = vmatmul.mubr.bf16.gmra.mxu0 %v1563
      %v1625 = vpop.f32.mrf.mxu0
      %v1626 = vadd.f32 0.0, %v1625
      %v1627 = vpop.f32.mrf.mxu0
      %v1628 = vpop.f32.mrf.mxu0
      %v1629 = vadd.f32 0.0, %v1628
      %v1630 = vpop.f32.mrf.mxu0
      %1631 = vmatprep.mubr.bf16.mxu0 0
      %1632 = vmatmul.mubr.bf16.gmra.mxu0 %v1566
      %v1633 = vpop.f32.mrf.mxu0
      %v1634 = vadd.f32 0.0, %v1633
      %v1635 = vpop.f32.mrf.mxu0
      %v1636 = vpop.f32.mrf.mxu0
      %v1637 = vadd.f32 0.0, %v1636
      %v1638 = vpop.f32.mrf.mxu0
      %1639 = vmatprep.mubr.bf16.mxu0 0
      %1640 = vmatmul.mubr.bf16.gmra.mxu0 %v1569
      %v1641 = vpop.f32.mrf.mxu0
      %v1642 = vadd.f32 0.0, %v1641
      %v1643 = vpop.f32.mrf.mxu0
      %v1644 = vpop.f32.mrf.mxu0
      %v1645 = vadd.f32 0.0, %v1644
      %v1646 = vpop.f32.mrf.mxu0
      %1647 = vdwg.mxu0
      %v1648 = vsel %vm789, %v1618, -inf
      %1649 = vmax.xlane.f32.xlu0 %v1648
      %v1650 = vpop.xlane.xlu0 %1649
      %v1651 = vsel %vm789, %v1621, -inf
      %1652 = vmax.xlane.f32.xlu0 %v1651
      %v1653 = vpop.xlane.xlu0 %1652
      %v1654 = vsel %vm789, %v1626, -inf
      %1655 = vmax.xlane.f32.xlu0 %v1654
      %v1656 = vpop.xlane.xlu0 %1655
      %v1657 = vsel %vm789, %v1629, -inf
      %1658 = vmax.xlane.f32.xlu0 %v1657
      %v1659 = vpop.xlane.xlu0 %1658
      %v1660 = vsel %vm789, %v1634, -inf
      %1661 = vmax.xlane.f32.xlu0 %v1660
      %v1662 = vpop.xlane.xlu0 %1661
      %v1663 = vsel %vm789, %v1637, -inf
      %1664 = vmax.xlane.f32.xlu0 %v1663
      %v1665 = vpop.xlane.xlu0 %1664
      %v1666 = vsel %vm789, %v1642, -inf
      %1667 = vmax.xlane.f32.xlu0 %v1666
      %v1668 = vpop.xlane.xlu0 %1667
      %v1669 = vsel %vm789, %v1645, -inf
      %1670 = vmax.xlane.f32.xlu0 %v1669
      %v1671 = vpop.xlane.xlu0 %1670
      %v1672 = vsub.f32 %v1618, %v1650
      %v1673 = vsub.f32 %v1621, %v1653
      %v1674 = vsub.f32 %v1626, %v1656
      %v1675 = vsub.f32 %v1629, %v1659
      %v1676 = vsub.f32 %v1634, %v1662
      %v1677 = vsub.f32 %v1637, %v1665
      %v1678 = vsub.f32 %v1642, %v1668
      %v1679 = vsub.f32 %v1645, %v1671
      %v1680 = vmul.f32 %v1672, 1.442695
      %v1681 = vpow.pop %v1680
      %v1682 = vmul.f32 %v1673, 1.442695
      %v1683 = vpow.pop %v1682
      %v1684 = vmul.f32 %v1674, 1.442695
      %v1685 = vpow.pop %v1684
      %v1686 = vmul.f32 %v1675, 1.442695
      %v1687 = vpow.pop %v1686
      %v1688 = vmul.f32 %v1676, 1.442695
      %v1689 = vpow.pop %v1688
      %v1690 = vmul.f32 %v1677, 1.442695
      %v1691 = vpow.pop %v1690
      %v1692 = vmul.f32 %v1678, 1.442695
      %v1693 = vpow.pop %v1692
      %v1694 = vmul.f32 %v1679, 1.442695
      %v1695 = vpow.pop %v1694
      %v1696 = vsel %vm789, %v1681, 0.0
      %1697 = vadd.xlane.f32.xlu0 %v1696
      %v1698 = vpop.xlane.xlu0 %1697
      %v1699 = vsel %vm789, %v1683, 0.0
      %1700 = vadd.xlane.f32.xlu0 %v1699
      %v1701 = vpop.xlane.xlu0 %1700
      %v1702 = vsel %vm789, %v1685, 0.0
      %1703 = vadd.xlane.f32.xlu0 %v1702
      %v1704 = vpop.xlane.xlu0 %1703
      %v1705 = vsel %vm789, %v1687, 0.0
      %1706 = vadd.xlane.f32.xlu0 %v1705
      %v1707 = vpop.xlane.xlu0 %1706
      %v1708 = vsel %vm789, %v1689, 0.0
      %1709 = vadd.xlane.f32.xlu0 %v1708
      %v1710 = vpop.xlane.xlu0 %1709
      %v1711 = vsel %vm789, %v1691, 0.0
      %1712 = vadd.xlane.f32.xlu0 %v1711
      %v1713 = vpop.xlane.xlu0 %1712
      %v1714 = vsel %vm789, %v1693, 0.0
      %1715 = vadd.xlane.f32.xlu0 %v1714
      %v1716 = vpop.xlane.xlu0 %1715
      %v1717 = vsel %vm789, %v1695, 0.0
      %1718 = vadd.xlane.f32.xlu0 %v1717
      %v1719 = vpop.xlane.xlu0 %1718
      %v1720 = vrcp.pop %v1698
      %v1721 = vrcp.pop %v1701
      %v1722 = vrcp.pop %v1704
      %v1723 = vrcp.pop %v1707
      %v1724 = vrcp.pop %v1710
      %v1725 = vrcp.pop %v1713
      %v1726 = vrcp.pop %v1716
      %v1727 = vrcp.pop %v1719
      %v1728 = vmul.f32 %v1681, %v1720
      %v1729 = vmul.f32 %v1683, %v1721
      %v1730 = vmul.f32 %v1685, %v1722
      %v1731 = vmul.f32 %v1687, %v1723
      %v1732 = vmul.f32 %v1689, %v1724
      %v1733 = vmul.f32 %v1691, %v1725
      %v1734 = vmul.f32 %v1693, %v1726
      %v1735 = vmul.f32 %v1695, %v1727
      %v1736 = vpack.c.bf16 %v1729, %v1728
      %v1737 = vpack.c.bf16 %v1731, %v1730
      %v1738 = vpack.c.bf16 %v1733, %v1732
      %v1739 = vpack.c.bf16 %v1735, %v1734
      %1740 = vrot.lane.b32.xlu0 %v687, 40
      %v1741 = vpop.permute.xlu0 %1740
      %1742 = vrot.lane.b32.xlu0 %v688, 40
      %v1743 = vpop.permute.xlu0 %1742
      %1744 = vrot.lane.b32.xlu0 %v689, 40
      %v1745 = vpop.permute.xlu0 %1744
      %1746 = vrot.lane.b32.xlu0 %v690, 40
      %v1747 = vpop.permute.xlu0 %1746
      %v1753 = vsel %vm789, %v1736, 0
      %v1756 = vsel %vm789, %v1737, 0
      %v1759 = vsel %vm789, %v1738, 0
      %v1762 = vsel %vm789, %v1739, 0
      %1764 = vmatprep.subr.bf16.mxu0 0
      %1765 = vmatpush1.bf16.msra.mxu0 0
      %1766 = vmatprep.subr.bf16.mxu0 0
      %1767 = vmatpush1.bf16.msra.mxu0 0
      %1768 = vmatprep.subr.bf16.mxu0 0
      %1769 = vmatpush1.bf16.msra.mxu0 0
      %1770 = vmatprep.subr.bf16.mxu0 0
      %1771 = vmatpush1.bf16.msra.mxu0 0
      %1772 = vmatprep.subr.bf16.mxu0 0
      %1773 = vmatpush1.bf16.msra.mxu0 %v1747
      %1774 = vmatprep.subr.bf16.mxu0 0
      %1775 = vmatpush1.bf16.msra.mxu0 %v1745
      %1776 = vmatprep.subr.bf16.mxu0 0
      %1777 = vmatpush1.bf16.msra.mxu0 %v1743
      %1778 = vmatprep.subr.bf16.mxu0 0
      %1779 = vmatpush1.bf16.msra.mxu0 %v1741
      %1780 = vmatprep.subr.bf16.mxu0 0
      %1781 = vmatpush2.bf16.msra.mxu0 0
      %1782 = vmatprep.subr.bf16.mxu0 0
      %1783 = vmatpush2.bf16.msra.mxu0 0
      %1784 = vmatprep.subr.bf16.mxu0 0
      %1785 = vmatpush2.bf16.msra.mxu0 0
      %1786 = vmatprep.subr.bf16.mxu0 0
      %1787 = vmatpush2.bf16.msra.mxu0 0
      %1788 = vmatprep.subr.bf16.mxu0 0
      %1789 = vmatpush2.bf16.msra.mxu0 0
      %1790 = vmatprep.subr.bf16.mxu0 0
      %1791 = vmatpush2.bf16.msra.mxu0 0
      %1792 = vmatprep.subr.bf16.mxu0 0
      %1793 = vmatpush2.bf16.msra.mxu0 0
      %1794 = vmatprep.subr.bf16.mxu0 0
      %1795 = vmatpush2.bf16.msra.mxu0 0
      %1796 = vmatprep.mubr.bf16.mxu0 0
      %1797 = vmatmul.mubr.bf16.gmra.mxu0 %v1753
      %v1798 = vpop.f32.mrf.mxu0
      %v1799 = vadd.f32 0.0, %v1798
      %v1800 = vpop.f32.mrf.mxu0
      %v1801 = vpop.f32.mrf.mxu0
      %v1802 = vadd.f32 0.0, %v1801
      %v1803 = vpop.f32.mrf.mxu0
      %1804 = vmatprep.mubr.bf16.mxu0 0
      %1805 = vmatmul.mubr.bf16.gmra.mxu0 %v1756
      %v1806 = vpop.f32.mrf.mxu0
      %v1807 = vadd.f32 0.0, %v1806
      %v1808 = vpop.f32.mrf.mxu0
      %v1809 = vpop.f32.mrf.mxu0
      %v1810 = vadd.f32 0.0, %v1809
      %v1811 = vpop.f32.mrf.mxu0
      %1812 = vmatprep.mubr.bf16.mxu0 0
      %1813 = vmatmul.mubr.bf16.gmra.mxu0 %v1759
      %v1814 = vpop.f32.mrf.mxu0
      %v1815 = vadd.f32 0.0, %v1814
      %v1816 = vpop.f32.mrf.mxu0
      %v1817 = vpop.f32.mrf.mxu0
      %v1818 = vadd.f32 0.0, %v1817
      %v1819 = vpop.f32.mrf.mxu0
      %1820 = vmatprep.mubr.bf16.mxu0 0
      %1821 = vmatmul.mubr.bf16.gmra.mxu0 %v1762
      %v1822 = vpop.f32.mrf.mxu0
      %v1823 = vadd.f32 0.0, %v1822
      %v1824 = vpop.f32.mrf.mxu0
      %v1825 = vpop.f32.mrf.mxu0
      %v1826 = vadd.f32 0.0, %v1825
      %v1827 = vpop.f32.mrf.mxu0
      %1828 = vdwg.mxu0
      %1837 = vrot.lane.b32.xlu0 %v1227, 8
      %v1838 = vpop.permute.xlu0 %1837
      %1839 = vrot.lane.b32.xlu0 %v1230, 8
      %v1840 = vpop.permute.xlu0 %1839
      %1841 = vrot.lane.b32.xlu0 %v1235, 8
      %v1842 = vpop.permute.xlu0 %1841
      %1843 = vrot.lane.b32.xlu0 %v1238, 8
      %v1844 = vpop.permute.xlu0 %1843
      %1845 = vrot.lane.b32.xlu0 %v1243, 8
      %v1846 = vpop.permute.xlu0 %1845
      %1847 = vrot.lane.b32.xlu0 %v1246, 8
      %v1848 = vpop.permute.xlu0 %1847
      %1849 = vrot.lane.b32.xlu0 %v1251, 8
      %v1850 = vpop.permute.xlu0 %1849
      %1851 = vrot.lane.b32.xlu0 %v1254, 8
      %v1852 = vpop.permute.xlu0 %1851
      %1869 = vrot.lane.b32.xlu0 %v1513, 16
      %v1870 = vpop.permute.xlu0 %1869
      %1871 = vrot.lane.b32.xlu0 %v1516, 16
      %v1872 = vpop.permute.xlu0 %1871
      %1873 = vrot.lane.b32.xlu0 %v1521, 16
      %v1874 = vpop.permute.xlu0 %1873
      %1875 = vrot.lane.b32.xlu0 %v1524, 16
      %v1876 = vpop.permute.xlu0 %1875
      %1877 = vrot.lane.b32.xlu0 %v1529, 16
      %v1878 = vpop.permute.xlu0 %1877
      %1879 = vrot.lane.b32.xlu0 %v1532, 16
      %v1880 = vpop.permute.xlu0 %1879
      %1881 = vrot.lane.b32.xlu0 %v1537, 16
      %v1882 = vpop.permute.xlu0 %1881
      %1883 = vrot.lane.b32.xlu0 %v1540, 16
      %v1884 = vpop.permute.xlu0 %1883
      %1901 = vrot.lane.b32.xlu0 %v1799, 24
      %v1902 = vpop.permute.xlu0 %1901
      %1903 = vrot.lane.b32.xlu0 %v1802, 24
      %v1904 = vpop.permute.xlu0 %1903
      %1905 = vrot.lane.b32.xlu0 %v1807, 24
      %v1906 = vpop.permute.xlu0 %1905
      %1907 = vrot.lane.b32.xlu0 %v1810, 24
      %v1908 = vpop.permute.xlu0 %1907
      %1909 = vrot.lane.b32.xlu0 %v1815, 24
      %v1910 = vpop.permute.xlu0 %1909
      %1911 = vrot.lane.b32.xlu0 %v1818, 24
      %v1912 = vpop.permute.xlu0 %1911
      %1913 = vrot.lane.b32.xlu0 %v1823, 24
      %v1914 = vpop.permute.xlu0 %1913
      %1915 = vrot.lane.b32.xlu0 %v1826, 24
      %v1916 = vpop.permute.xlu0 %1915
      %v1925 = vsel %vm699, %v941, %v1838
      %v1926 = vsel %vm699, %v944, %v1840
      %v1927 = vsel %vm699, %v949, %v1842
      %v1928 = vsel %vm699, %v952, %v1844
      %v1929 = vsel %vm699, %v957, %v1846
      %v1930 = vsel %vm699, %v960, %v1848
      %v1931 = vsel %vm699, %v965, %v1850
      %v1932 = vsel %vm699, %v968, %v1852
      %vm1933 = vcmask 130048
      %v1934 = vsel %vm1933, %v1925, %v1870
      %v1935 = vsel %vm1933, %v1926, %v1872
      %v1936 = vsel %vm1933, %v1927, %v1874
      %v1937 = vsel %vm1933, %v1928, %v1876
      %v1938 = vsel %vm1933, %v1929, %v1878
      %v1939 = vsel %vm1933, %v1930, %v1880
      %v1940 = vsel %vm1933, %v1931, %v1882
      %v1941 = vsel %vm1933, %v1932, %v1884
      %vm1942 = vcmask 195584
      %v1943 = vsel %vm1942, %v1934, %v1902
      %v1944 = vsel %vm1942, %v1935, %v1904
      %v1945 = vsel %vm1942, %v1936, %v1906
      %v1946 = vsel %vm1942, %v1937, %v1908
      %v1947 = vsel %vm1942, %v1938, %v1910
      %v1948 = vsel %vm1942, %v1939, %v1912
      %v1949 = vsel %vm1942, %v1940, %v1914
      %v1950 = vsel %vm1942, %v1941, %v1916
      %v1951 = vld [vmem:[%s299] sm:$0xff]
      %v1952 = vld [vmem:[%s299 + $0x8] sm:$0xff]
      %v1953 = vld [vmem:[%s299 + $0x10] sm:$0xff]
      %v1954 = vld [vmem:[%s299 + $0x18] sm:$0xff]
      %v1955 = vld [vmem:[%s299 + $0x20] sm:$0xff]
      %v1956 = vld [vmem:[%s299 + $0x28] sm:$0xff]
      %v1957 = vld [vmem:[%s299 + $0x30] sm:$0xff]
      %v1958 = vld [vmem:[%s299 + $0x38] sm:$0xff]
      %v1959 = vadd.f32 %v1951, %v1943
      %v1960 = vadd.f32 %v1952, %v1944
      %v1961 = vadd.f32 %v1953, %v1945
      %v1962 = vadd.f32 %v1954, %v1946
      %v1963 = vadd.f32 %v1955, %v1947
      %v1964 = vadd.f32 %v1956, %v1948
      %v1965 = vadd.f32 %v1957, %v1949
      %v1966 = vadd.f32 %v1958, %v1950
      %vm1967 = vcmask 261120
      %1968 = vst.msk [vmem:[%s309] sm:$0xff] %vm1967, %v1959
      %1969 = vst.msk [vmem:[%s309 + $0x8] sm:$0xff] %vm1967, %v1960
      %1970 = vst.msk [vmem:[%s309 + $0x10] sm:$0xff] %vm1967, %v1961
      %1971 = vst.msk [vmem:[%s309 + $0x18] sm:$0xff] %vm1967, %v1962
      %1972 = vst.msk [vmem:[%s309 + $0x20] sm:$0xff] %vm1967, %v1963
      %1973 = vst.msk [vmem:[%s309 + $0x28] sm:$0xff] %vm1967, %v1964
      %1974 = vst.msk [vmem:[%s309 + $0x30] sm:$0xff] %vm1967, %v1965
      %1975 = vst.msk [vmem:[%s309 + $0x38] sm:$0xff] %vm1967, %v1966
      %s1976 = smul.u32 8, %s22
      %p1977 = scmp.lt.s32.totalorder %s21, 1
      %s1978 = scalar_select %p1977, %s21, 1
      %p1979 = scmp.lt.s32.totalorder %s1976, 7
      %s1980 = scalar_select %p1979, %s1976, 7
      %s1981 = smul.addr %s1978, 8
      %s1982 = sadd.s32 %s1980, %s1981
      %s1983 = smul.addr %s1982, 8
      %s1984 = scalar_lea.vmem %s6, %s1983
      // Predicated region
      $region49: #{tpu_custom_call.1} parent=43 // pred_check
        %p1985 = pneg %p187
      $region50: #{tpu_custom_call.1} parent=43 // pred_check_branch
        %1987 = sbr.rel (%p1985) target = $region52
      $region51: #{tpu_custom_call.1} parent=43 // pred_region
        %s1988 = smul.u32 8, %s22
      $region52: #{tpu_custom_call.1} parent=43 // pred_fallthru
        _
    $region44: #{tpu_custom_call.1} parent=5 // pred_fallthru
      _
    %p1989 = scmp.le.s32.totalorder 2, %s12
    // Predicated region
    $region53: #{tpu_custom_call.1} parent=5 // pred_check
      %p1990 = pneg %p1989
    $region54: #{tpu_custom_call.1} parent=5 // pred_check_branch
      %1992 = sbr.rel (%p1990) target = $region56
    $region55: #{tpu_custom_call.1} parent=5 // pred_region
      %s1993 = ssub.s32 %s12, 2
      // Predicated region
      $region57: #{tpu_custom_call.1} parent=55 // pred_check
        %p1994 = pneg %p193
      $region58: #{tpu_custom_call.1} parent=55 // pred_check_branch
        %1996 = sbr.rel (%p1994) target = $region60
      $region59: #{tpu_custom_call.1} parent=55 // pred_region
        %s1997 = smul.u32 8, %s24
        %p1998 = scmp.lt.s32.totalorder %s23, 1
        %s1999 = scalar_select %p1998, %s23, 1
        %p2000 = scmp.lt.s32.totalorder %s1997, 7
        %s2001 = scalar_select %p2000, %s1997, 7
        %s2002 = smul.addr %s1999, 8
        %s2003 = sadd.s32 %s2001, %s2002
        %s2004 = smul.addr %s2003, 8
        %s2005 = scalar_lea.vmem %s6, %s2004
      $region60: #{tpu_custom_call.1} parent=55 // pred_fallthru
        _
    $region56: #{tpu_custom_call.1} parent=5 // pred_fallthru
      _
  $region6: #{tpu_custom_call.1} parent=0 // loop_footer
    %s16 = sadd.s32 1, %s12
  $region7: #{tpu_custom_call.1} parent=0 // loop_footer_branch
    %11 = sbr.rel target = $region3
  $region8: #{tpu_custom_call.1} parent=0 // loop_exit
    _

</llo_original>
